<compile_context>
chip_gen: v7x
topology: tpu7x:2x2x1
jax: 0.10.0
libtpu: 0.0.40
codegen_flags: <defaults>
</compile_context>

<pallas_src>
import functools

import jax
import jax.numpy as jnp
from jax.experimental import pallas as pl
from jax.experimental.pallas import tpu as pltpu

LANE = 128


def _rup(x, m):
    return ((x + m - 1) // m) * m


# ----------------------------------------------------------------------------
# One-time parameter preparation (hoisted out of the per-call forward path).
# ----------------------------------------------------------------------------
def prepare_edesc_params(params, *, use_bf16=True):
    """Pre-pad / pre-cast the 8 (W, b) pairs once.

    params: list of (W: (din, dout), b: (dout,) or (1, dout)) in layer order
            [enc_1, enc_2, enc_3, z_layer, dec_1, dec_2, dec_3, x_bar_layer].
    The first layer's input dim (x features) is left unpadded; every layer
    *output* dim is zero-padded to a multiple of 128 lanes so all kernel
    stores / inter-layer activations are lane-dense.  Padded rows/cols are
    zero, so padded lanes stay exactly zero through the ReLU chain.

    Returns (weights: tuple of 8 padded (in_p, out_p) arrays,
             b_all:   (8, max_out_p) f32 array of stacked padded biases).
    """
    w_dtype = jnp.bfloat16 if use_bf16 else jnp.float32
    dout_ps = [_rup(w.shape[1], LANE) for (w, _) in params]
    max_p = max(dout_ps)

    weights = []
    b_rows = []
    in_p = params[0][0].shape[0]  # true n_input, intentionally unpadded
    for (w, b), dout_p in zip(params, dout_ps):
        din, dout = w.shape
        w_p = jnp.zeros((in_p, dout_p), jnp.float32).at[:din, :dout].set(w)
        weights.append(w_p.astype(w_dtype))
        b_rows.append(jnp.zeros((max_p,), jnp.float32)
                      .at[:dout].set(jnp.reshape(b, (-1,))))
        in_p = dout_p
    return tuple(weights), jnp.stack(b_rows, axis=0)


# ----------------------------------------------------------------------------
# Kernel
# ----------------------------------------------------------------------------
def _make_kernel(n_layers):
    z_idx = n_layers // 2 - 1  # z_layer position (no activation, extra output)

    def kernel(*refs):
        x_ref = refs[0]
        w_refs = refs[1:1 + n_layers]
        b_all_ref = refs[1 + n_layers]
        xbar_ref = refs[2 + n_layers]
        z_ref = refs[3 + n_layers]

        biases = b_all_ref[...]  # (n_layers, max_out_p) f32 - one VMEM tile

        def linear(h, k):
            w = w_refs[k]
            dout_p = w.shape[1]
            acc = jnp.dot(h.astype(w.dtype), w[...],
                          preferred_element_type=jnp.float32)
            return acc + biases[k:k + 1, :dout_p]

        h = x_ref[...].astype(jnp.float32)
        for k in range(n_layers):           # unrolled at trace time (8 layers)
            pre = linear(h, k)
            if k == z_idx:
                z_ref[...] = pre.astype(z_ref.dtype)
                h = pre                      # z_layer: no activation
            elif k == n_layers - 1:
                xbar_ref[...] = pre.astype(xbar_ref.dtype)
            else:
                # Bias/ReLU kept in f32 for v5e (no bf16 VALU); a bf16 epilogue
                # on v6e/v7x is a possible minor further win.
                h = jnp.maximum(pre, 0.0)

    return kernel


# ----------------------------------------------------------------------------
# Forward wrapper (jitted: batch pad / output slice fuse with the kernel call)
# ----------------------------------------------------------------------------
@functools.partial(jax.jit,
                   static_argnames=("n_z", "num_blocks", "single_buffer_params"))
def edesc_ae_forward(x, weights, b_all, *, n_z, num_blocks=1,
                     single_buffer_params=True):
    """Fused EDESC_AE forward.  num_blocks=1 for v5e/v6e (single TensorCore),
    num_blocks=2 on v7x so the batch grid shards evenly across both cores."""
    B, n_input = x.shape
    n_layers = len(weights)
    dout_ps = [w.shape[1] for w in weights]
    n_in_p = dout_ps[-1]                    # padded x_bar feature dim
    n_z_p = dout_ps[n_layers // 2 - 1]      # padded z feature dim

    # Batch tile: one (sublane-rounded) block per requested grid step.
    bm = _rup(max(1, -(-B // num_blocks)), 8)
    Bp = bm * num_blocks
    if Bp != B:
        x = jnp.zeros((Bp, n_input), x.dtype).at[:B].set(x)

    # Resident (constant-index) weight/bias blocks; single-buffer if supported.
    param_kwargs = {}
    if single_buffer_params and hasattr(pl, "Buffered"):
        param_kwargs = {"pipeline_mode": pl.Buffered(1)}
    w_specs = [pl.BlockSpec(w.shape, lambda i: (0, 0), **param_kwargs)
               for w in weights]
    b_spec = pl.BlockSpec(b_all.shape, lambda i: (0, 0), **param_kwargs)

    flops = 2 * Bp * sum(w.shape[0] * w.shape[1] for w in weights)
    bytes_accessed = (x.size * x.dtype.itemsize
                      + sum(w.size * w.dtype.itemsize for w in weights)
                      + b_all.size * b_all.dtype.itemsize
                      + Bp * (n_in_p + n_z_p) * 4)

    grid_spec = pltpu.PrefetchScalarGridSpec(
        num_scalar_prefetch=0,
        grid=(num_blocks,),
        in_specs=([pl.BlockSpec((bm, n_input), lambda i: (i, 0))]
                  + w_specs + [b_spec]),
        out_specs=[pl.BlockSpec((bm, n_in_p), lambda i: (i, 0)),
                   pl.BlockSpec((bm, n_z_p), lambda i: (i, 0))],
    )

    x_bar_p, z_p = pl.pallas_call(
        _make_kernel(n_layers),
        out_shape=(jax.ShapeDtypeStruct((Bp, n_in_p), jnp.float32),
                   jax.ShapeDtypeStruct((Bp, n_z_p), jnp.float32)),
        grid_spec=grid_spec,
        compiler_params=pltpu.CompilerParams(
            dimension_semantics=("parallel",)),
        cost_estimate=pl.CostEstimate(flops=flops, transcendentals=0,
                                      bytes_accessed=bytes_accessed),
    )(x, *weights, b_all)

    # Slice back to true dims inside jit (fuses; padded lanes are exactly 0).
    return x_bar_p[:B, :n_input], z_p[:B, :n_z]


def _run_forward(x, weights, b_all, *, n_z, num_blocks, prefer_single_buffer):
    """Run forward, falling back to default double-buffering if this JAX build
    rejects pipeline_mode=pl.Buffered(1) for the resident parameter blocks."""
    if prefer_single_buffer:
        try:
            out = edesc_ae_forward(x, weights, b_all, n_z=n_z,
                                   num_blocks=num_blocks,
                                   single_buffer_params=True)
            jax.block_until_ready(out)
            return out, True
        except Exception:
            pass
    out = edesc_ae_forward(x, weights, b_all, n_z=n_z, num_blocks=num_blocks,
                           single_buffer_params=False)
    jax.block_until_ready(out)
    return out, False


# ----------------------------------------------------------------------------
# Init + pure-JAX reference
# ----------------------------------------------------------------------------
def init_linear(key, in_features, out_features):
    """torch.nn.Linear-style uniform(-1/sqrt(in), 1/sqrt(in)) init.
    Returns (W transposed to (in, out), b: (1, out))."""
    kw, kb = jax.random.split(key)
    bound = 1.0 / jnp.sqrt(jnp.float32(in_features))
    w = jax.random.uniform(kw, (in_features, out_features), jnp.float32,
                           minval=-bound, maxval=bound)
    b = jax.random.uniform(kb, (1, out_features), jnp.float32,
                           minval=-bound, maxval=bound)
    return w, b


def reference_forward(x, params, matmul_dtype=jnp.float32):
    """Pure-JAX reference.  matmul_dtype=bfloat16 mirrors the bf16-MXU kernel."""
    def lin(h, wb):
        w, b = wb
        return (jnp.dot(h.astype(matmul_dtype), w.astype(matmul_dtype),
                        preferred_element_type=jnp.float32)
                + jnp.reshape(b, (1, -1)))
    h = jax.nn.relu(lin(x, params[0]))
    h = jax.nn.relu(lin(h, params[1]))
    h = jax.nn.relu(lin(h, params[2]))
    z = lin(h, params[3])
    h = jax.nn.relu(lin(z, params[4]))
    h = jax.nn.relu(lin(h, params[5]))
    h = jax.nn.relu(lin(h, params[6]))
    x_bar = lin(h, params[7])
    return x_bar, z


# ----------------------------------------------------------------------------
# Self-test
# ----------------------------------------------------------------------------
if __name__ == "__main__":
    batch = 32
    n_input = 64
    encoder_dims = [128, 64, 32]
    n_z = 16
    decoder_dims = [32, 64, 128]

    key = jax.random.PRNGKey(0)
    k_x, *k_layers = jax.random.split(key, 9)

    layer_dims = [
        (n_input, encoder_dims[0]),          # enc_1
        (encoder_dims[0], encoder_dims[1]),  # enc_2
        (encoder_dims[1], encoder_dims[2]),  # enc_3
        (encoder_dims[2], n_z),              # z_layer
        (n_z, decoder_dims[0]),              # dec_1
        (decoder_dims[0], decoder_dims[1]),  # dec_2
        (decoder_dims[1], decoder_dims[2]),  # dec_3
        (decoder_dims[2], n_input),          # x_bar_layer
    ]
    params = [init_linear(k, din, dout)
              for k, (din, dout) in zip(k_layers, layer_dims)]
    x = jax.random.normal(k_x, (batch, n_input), jnp.float32)

    # --- f32-matmul path: check against the pure-JAX reference -------------
    w_f32, b_all_f32 = prepare_edesc_params(params, use_bf16=False)
    (x_bar, z), sb_ok = _run_forward(x, w_f32, b_all_f32, n_z=n_z,
                                     num_blocks=1, prefer_single_buffer=True)
    x_bar_ref, z_ref = reference_forward(x, params)
    assert x_bar.shape == (batch, n_input) and z.shape == (batch, n_z)
    assert jnp.allclose(x_bar, x_bar_ref, atol=1e-2, rtol=1e-2)
    assert jnp.allclose(z, z_ref, atol=1e-2, rtol=1e-2)

    # --- bf16-MXU path (default): check against a bf16-matched reference ---
    w_bf16, b_all_bf16 = prepare_edesc_params(params, use_bf16=True)
    (x_bar_bf, z_bf), sb_ok = _run_forward(x, w_bf16, b_all_bf16, n_z=n_z,
                                           num_blocks=1,
                                           prefer_single_buffer=sb_ok)
    x_bar_ref_bf, z_ref_bf = reference_forward(x, params,
                                               matmul_dtype=jnp.bfloat16)
    assert jnp.allclose(x_bar_bf, x_bar_ref_bf, atol=2e-2, rtol=2e-2)
    assert jnp.allclose(z_bf, z_ref_bf, atol=2e-2, rtol=2e-2)

    # --- 2-block grid (v7x-style megacore sharding of the batch axis) ------
    (x_bar_2, z_2), sb_ok = _run_forward(x, w_bf16, b_all_bf16, n_z=n_z,
                                         num_blocks=2,
                                         prefer_single_buffer=sb_ok)
    assert jnp.allclose(x_bar_2, x_bar_bf, atol=2e-2, rtol=2e-2)
    assert jnp.allclose(z_2, z_bf, atol=2e-2, rtol=2e-2)

    print("KERNEL_OK")
</pallas_src>

<mosaic_0001>
module attributes {stable_mosaic.version = 11 : i64} {
  func.func @kernel(%arg0: i32, %arg1: memref<32x64xf32, #tpu.memory_space<vmem>>, %arg2: memref<64x128xf32, #tpu.memory_space<vmem>>, %arg3: memref<128x128xf32, #tpu.memory_space<vmem>>, %arg4: memref<128x128xf32, #tpu.memory_space<vmem>>, %arg5: memref<128x128xf32, #tpu.memory_space<vmem>>, %arg6: memref<128x128xf32, #tpu.memory_space<vmem>>, %arg7: memref<128x128xf32, #tpu.memory_space<vmem>>, %arg8: memref<128x128xf32, #tpu.memory_space<vmem>>, %arg9: memref<128x128xf32, #tpu.memory_space<vmem>>, %arg10: memref<8x128xf32, #tpu.memory_space<vmem>>, %arg11: memref<32x128xf32, #tpu.memory_space<vmem>>, %arg12: memref<32x128xf32, #tpu.memory_space<vmem>>) attributes {dimension_semantics = [#tpu.dimension_semantics<parallel>], iteration_bounds = array<i64: 1>, scalar_prefetch = 0 : i64, scratch_operands = 0 : i64, tpu.core_type = #tpu.core_type<tc>, window_params = [{transform_indices = @transform_0, window_bounds = array<i64: 32, 64>}, {pipeline_mode = #tpu.pipeline_mode<synchronous>, transform_indices = @transform_1, window_bounds = array<i64: 64, 128>}, {pipeline_mode = #tpu.pipeline_mode<synchronous>, transform_indices = @transform_2, window_bounds = array<i64: 128, 128>}, {pipeline_mode = #tpu.pipeline_mode<synchronous>, transform_indices = @transform_3, window_bounds = array<i64: 128, 128>}, {pipeline_mode = #tpu.pipeline_mode<synchronous>, transform_indices = @transform_4, window_bounds = array<i64: 128, 128>}, {pipeline_mode = #tpu.pipeline_mode<synchronous>, transform_indices = @transform_5, window_bounds = array<i64: 128, 128>}, {pipeline_mode = #tpu.pipeline_mode<synchronous>, transform_indices = @transform_6, window_bounds = array<i64: 128, 128>}, {pipeline_mode = #tpu.pipeline_mode<synchronous>, transform_indices = @transform_7, window_bounds = array<i64: 128, 128>}, {pipeline_mode = #tpu.pipeline_mode<synchronous>, transform_indices = @transform_8, window_bounds = array<i64: 128, 128>}, {pipeline_mode = #tpu.pipeline_mode<synchronous>, transform_indices = @transform_9, window_bounds = array<i64: 8, 128>}, {transform_indices = @transform_10, window_bounds = array<i64: 32, 128>}, {transform_indices = @transform_11, window_bounds = array<i64: 32, 128>}]} {
    %c0 = arith.constant 0 : index
    %c0_0 = arith.constant 0 : index
    %0 = vector.load %arg10[%c0, %c0_0] : memref<8x128xf32, #tpu.memory_space<vmem>>, vector<8x128xf32>
    %c0_1 = arith.constant 0 : index
    %c0_2 = arith.constant 0 : index
    %1 = vector.load %arg1[%c0_1, %c0_2] : memref<32x64xf32, #tpu.memory_space<vmem>>, vector<32x64xf32>
    %c0_3 = arith.constant 0 : index
    %c0_4 = arith.constant 0 : index
    %2 = vector.load %arg2[%c0_3, %c0_4] : memref<64x128xf32, #tpu.memory_space<vmem>>, vector<64x128xf32>
    %cst = arith.constant dense<0.000000e+00> : vector<32x128xf32>
    %3 = tpu.matmul %1, %2, %cst {dimension_numbers = #tpu.dot_dimension_numbers<[1], [0], [0], [1], [0, 0, 1, 1], [], []>} : vector<32x64xf32>, vector<64x128xf32>, vector<32x128xf32> -> vector<32x128xf32>
    %4 = vector.extract_strided_slice %0 {offsets = [0, 0], sizes = [1, 128], strides = [1, 1]} : vector<8x128xf32> to vector<1x128xf32>
    %5 = vector.broadcast %4 : vector<1x128xf32> to vector<32x128xf32>
    %6 = arith.addf %3, %5 : vector<32x128xf32>
    %cst_5 = arith.constant 0.000000e+00 : f32
    %7 = vector.broadcast %cst_5 : f32 to vector<32x128xf32>
    %8 = arith.maximumf %6, %7 : vector<32x128xf32>
    %c0_6 = arith.constant 0 : index
    %c0_7 = arith.constant 0 : index
    %9 = vector.load %arg3[%c0_6, %c0_7] : memref<128x128xf32, #tpu.memory_space<vmem>>, vector<128x128xf32>
    %cst_8 = arith.constant dense<0.000000e+00> : vector<32x128xf32>
    %10 = tpu.matmul %8, %9, %cst_8 {dimension_numbers = #tpu.dot_dimension_numbers<[1], [0], [0], [1], [0, 0, 1, 1], [], []>} : vector<32x128xf32>, vector<128x128xf32>, vector<32x128xf32> -> vector<32x128xf32>
    %11 = vector.extract_strided_slice %0 {offsets = [1, 0], sizes = [1, 128], strides = [1, 1]} : vector<8x128xf32> to vector<1x128xf32>
    %12 = vector.broadcast %11 : vector<1x128xf32> to vector<32x128xf32>
    %13 = arith.addf %10, %12 : vector<32x128xf32>
    %cst_9 = arith.constant 0.000000e+00 : f32
    %14 = vector.broadcast %cst_9 : f32 to vector<32x128xf32>
    %15 = arith.maximumf %13, %14 : vector<32x128xf32>
    %c0_10 = arith.constant 0 : index
    %c0_11 = arith.constant 0 : index
    %16 = vector.load %arg4[%c0_10, %c0_11] : memref<128x128xf32, #tpu.memory_space<vmem>>, vector<128x128xf32>
    %cst_12 = arith.constant dense<0.000000e+00> : vector<32x128xf32>
    %17 = tpu.matmul %15, %16, %cst_12 {dimension_numbers = #tpu.dot_dimension_numbers<[1], [0], [0], [1], [0, 0, 1, 1], [], []>} : vector<32x128xf32>, vector<128x128xf32>, vector<32x128xf32> -> vector<32x128xf32>
    %18 = vector.extract_strided_slice %0 {offsets = [2, 0], sizes = [1, 128], strides = [1, 1]} : vector<8x128xf32> to vector<1x128xf32>
    %19 = vector.broadcast %18 : vector<1x128xf32> to vector<32x128xf32>
    %20 = arith.addf %17, %19 : vector<32x128xf32>
    %cst_13 = arith.constant 0.000000e+00 : f32
    %21 = vector.broadcast %cst_13 : f32 to vector<32x128xf32>
    %22 = arith.maximumf %20, %21 : vector<32x128xf32>
    %c0_14 = arith.constant 0 : index
    %c0_15 = arith.constant 0 : index
    %23 = vector.load %arg5[%c0_14, %c0_15] : memref<128x128xf32, #tpu.memory_space<vmem>>, vector<128x128xf32>
    %cst_16 = arith.constant dense<0.000000e+00> : vector<32x128xf32>
    %24 = tpu.matmul %22, %23, %cst_16 {dimension_numbers = #tpu.dot_dimension_numbers<[1], [0], [0], [1], [0, 0, 1, 1], [], []>} : vector<32x128xf32>, vector<128x128xf32>, vector<32x128xf32> -> vector<32x128xf32>
    %25 = vector.extract_strided_slice %0 {offsets = [3, 0], sizes = [1, 128], strides = [1, 1]} : vector<8x128xf32> to vector<1x128xf32>
    %26 = vector.broadcast %25 : vector<1x128xf32> to vector<32x128xf32>
    %27 = arith.addf %24, %26 : vector<32x128xf32>
    %c0_17 = arith.constant 0 : index
    %c0_18 = arith.constant 0 : index
    %28 = vector.load %arg12[%c0_17, %c0_18] : memref<32x128xf32, #tpu.memory_space<vmem>>, vector<32x128xf32>
    tpu.vector_store %arg12[%c0_17, %c0_18], %27 {strides = array<i32>} : memref<32x128xf32, #tpu.memory_space<vmem>>, vector<32x128xf32>,
    %c0_19 = arith.constant 0 : index
    %c0_20 = arith.constant 0 : index
    %29 = vector.load %arg6[%c0_19, %c0_20] : memref<128x128xf32, #tpu.memory_space<vmem>>, vector<128x128xf32>
    %cst_21 = arith.constant dense<0.000000e+00> : vector<32x128xf32>
    %30 = tpu.matmul %27, %29, %cst_21 {dimension_numbers = #tpu.dot_dimension_numbers<[1], [0], [0], [1], [0, 0, 1, 1], [], []>} : vector<32x128xf32>, vector<128x128xf32>, vector<32x128xf32> -> vector<32x128xf32>
    %31 = vector.extract_strided_slice %0 {offsets = [4, 0], sizes = [1, 128], strides = [1, 1]} : vector<8x128xf32> to vector<1x128xf32>
    %32 = vector.broadcast %31 : vector<1x128xf32> to vector<32x128xf32>
    %33 = arith.addf %30, %32 : vector<32x128xf32>
    %cst_22 = arith.constant 0.000000e+00 : f32
    %34 = vector.broadcast %cst_22 : f32 to vector<32x128xf32>
    %35 = arith.maximumf %33, %34 : vector<32x128xf32>
    %c0_23 = arith.constant 0 : index
    %c0_24 = arith.constant 0 : index
    %36 = vector.load %arg7[%c0_23, %c0_24] : memref<128x128xf32, #tpu.memory_space<vmem>>, vector<128x128xf32>
    %cst_25 = arith.constant dense<0.000000e+00> : vector<32x128xf32>
    %37 = tpu.matmul %35, %36, %cst_25 {dimension_numbers = #tpu.dot_dimension_numbers<[1], [0], [0], [1], [0, 0, 1, 1], [], []>} : vector<32x128xf32>, vector<128x128xf32>, vector<32x128xf32> -> vector<32x128xf32>
    %38 = vector.extract_strided_slice %0 {offsets = [5, 0], sizes = [1, 128], strides = [1, 1]} : vector<8x128xf32> to vector<1x128xf32>
    %39 = vector.broadcast %38 : vector<1x128xf32> to vector<32x128xf32>
    %40 = arith.addf %37, %39 : vector<32x128xf32>
    %cst_26 = arith.constant 0.000000e+00 : f32
    %41 = vector.broadcast %cst_26 : f32 to vector<32x128xf32>
    %42 = arith.maximumf %40, %41 : vector<32x128xf32>
    %c0_27 = arith.constant 0 : index
    %c0_28 = arith.constant 0 : index
    %43 = vector.load %arg8[%c0_27, %c0_28] : memref<128x128xf32, #tpu.memory_space<vmem>>, vector<128x128xf32>
    %cst_29 = arith.constant dense<0.000000e+00> : vector<32x128xf32>
    %44 = tpu.matmul %42, %43, %cst_29 {dimension_numbers = #tpu.dot_dimension_numbers<[1], [0], [0], [1], [0, 0, 1, 1], [], []>} : vector<32x128xf32>, vector<128x128xf32>, vector<32x128xf32> -> vector<32x128xf32>
    %45 = vector.extract_strided_slice %0 {offsets = [6, 0], sizes = [1, 128], strides = [1, 1]} : vector<8x128xf32> to vector<1x128xf32>
    %46 = vector.broadcast %45 : vector<1x128xf32> to vector<32x128xf32>
    %47 = arith.addf %44, %46 : vector<32x128xf32>
    %cst_30 = arith.constant 0.000000e+00 : f32
    %48 = vector.broadcast %cst_30 : f32 to vector<32x128xf32>
    %49 = arith.maximumf %47, %48 : vector<32x128xf32>
    %c0_31 = arith.constant 0 : index
    %c0_32 = arith.constant 0 : index
    %50 = vector.load %arg9[%c0_31, %c0_32] : memref<128x128xf32, #tpu.memory_space<vmem>>, vector<128x128xf32>
    %cst_33 = arith.constant dense<0.000000e+00> : vector<32x128xf32>
    %51 = tpu.matmul %49, %50, %cst_33 {dimension_numbers = #tpu.dot_dimension_numbers<[1], [0], [0], [1], [0, 0, 1, 1], [], []>} : vector<32x128xf32>, vector<128x128xf32>, vector<32x128xf32> -> vector<32x128xf32>
    %52 = vector.extract_strided_slice %0 {offsets = [7, 0], sizes = [1, 128], strides = [1, 1]} : vector<8x128xf32> to vector<1x128xf32>
    %53 = vector.broadcast %52 : vector<1x128xf32> to vector<32x128xf32>
    %54 = arith.addf %51, %53 : vector<32x128xf32>
    %c0_34 = arith.constant 0 : index
    %c0_35 = arith.constant 0 : index
    %55 = vector.load %arg11[%c0_34, %c0_35] : memref<32x128xf32, #tpu.memory_space<vmem>>, vector<32x128xf32>
    tpu.vector_store %arg11[%c0_34, %c0_35], %54 {strides = array<i32>} : memref<32x128xf32, #tpu.memory_space<vmem>>, vector<32x128xf32>,
    return
  }
  func.func @transform_0(%arg0: i32) -> (i32, i32) {
    %c0_i32 = arith.constant 0 : i32
    %c0_i32_0 = arith.constant 0 : i32
    return %arg0, %c0_i32 : i32, i32
  }
  func.func @transform_1(%arg0: i32) -> (i32, i32) {
    %c0_i32 = arith.constant 0 : i32
    %c0_i32_0 = arith.constant 0 : i32
    %c0_i32_1 = arith.constant 0 : i32
    return %c0_i32, %c0_i32_0 : i32, i32
  }
  func.func @transform_2(%arg0: i32) -> (i32, i32) {
    %c0_i32 = arith.constant 0 : i32
    %c0_i32_0 = arith.constant 0 : i32
    %c0_i32_1 = arith.constant 0 : i32
    return %c0_i32, %c0_i32_0 : i32, i32
  }
  func.func @transform_3(%arg0: i32) -> (i32, i32) {
    %c0_i32 = arith.constant 0 : i32
    %c0_i32_0 = arith.constant 0 : i32
    %c0_i32_1 = arith.constant 0 : i32
    return %c0_i32, %c0_i32_0 : i32, i32
  }
  func.func @transform_4(%arg0: i32) -> (i32, i32) {
    %c0_i32 = arith.constant 0 : i32
    %c0_i32_0 = arith.constant 0 : i32
    %c0_i32_1 = arith.constant 0 : i32
    return %c0_i32, %c0_i32_0 : i32, i32
  }
  func.func @transform_5(%arg0: i32) -> (i32, i32) {
    %c0_i32 = arith.constant 0 : i32
    %c0_i32_0 = arith.constant 0 : i32
    %c0_i32_1 = arith.constant 0 : i32
    return %c0_i32, %c0_i32_0 : i32, i32
  }
  func.func @transform_6(%arg0: i32) -> (i32, i32) {
    %c0_i32 = arith.constant 0 : i32
    %c0_i32_0 = arith.constant 0 : i32
    %c0_i32_1 = arith.constant 0 : i32
    return %c0_i32, %c0_i32_0 : i32, i32
  }
  func.func @transform_7(%arg0: i32) -> (i32, i32) {
    %c0_i32 = arith.constant 0 : i32
    %c0_i32_0 = arith.constant 0 : i32
    %c0_i32_1 = arith.constant 0 : i32
    return %c0_i32, %c0_i32_0 : i32, i32
  }
  func.func @transform_8(%arg0: i32) -> (i32, i32) {
    %c0_i32 = arith.constant 0 : i32
    %c0_i32_0 = arith.constant 0 : i32
    %c0_i32_1 = arith.constant 0 : i32
    return %c0_i32, %c0_i32_0 : i32, i32
  }
  func.func @transform_9(%arg0: i32) -> (i32, i32) {
    %c0_i32 = arith.constant 0 : i32
    %c0_i32_0 = arith.constant 0 : i32
    %c0_i32_1 = arith.constant 0 : i32
    return %c0_i32, %c0_i32_0 : i32, i32
  }
  func.func @transform_10(%arg0: i32) -> (i32, i32) {
    %c0_i32 = arith.constant 0 : i32
    %c0_i32_0 = arith.constant 0 : i32
    return %arg0, %c0_i32 : i32, i32
  }
  func.func @transform_11(%arg0: i32) -> (i32, i32) {
    %c0_i32 = arith.constant 0 : i32
    %c0_i32_0 = arith.constant 0 : i32
    return %arg0, %c0_i32 : i32, i32
  }
}

module attributes {stable_mosaic.version = 11 : i64} {
  func.func @kernel(%arg0: i32, %arg1: memref<32x64xf32, #tpu.memory_space<vmem>>, %arg2: memref<64x128xf32, #tpu.memory_space<vmem>>, %arg3: memref<128x128xf32, #tpu.memory_space<vmem>>, %arg4: memref<128x128xf32, #tpu.memory_space<vmem>>, %arg5: memref<128x128xf32, #tpu.memory_space<vmem>>, %arg6: memref<128x128xf32, #tpu.memory_space<vmem>>, %arg7: memref<128x128xf32, #tpu.memory_space<vmem>>, %arg8: memref<128x128xf32, #tpu.memory_space<vmem>>, %arg9: memref<128x128xf32, #tpu.memory_space<vmem>>, %arg10: memref<8x128xf32, #tpu.memory_space<vmem>>, %arg11: memref<32x128xf32, #tpu.memory_space<vmem>>, %arg12: memref<32x128xf32, #tpu.memory_space<vmem>>) attributes {dimension_semantics = [#tpu.dimension_semantics<parallel>], iteration_bounds = array<i64: 1>, scalar_prefetch = 0 : i64, scratch_operands = 0 : i64, tpu.core_type = #tpu.core_type<tc>, window_params = [{transform_indices = @transform_0, window_bounds = array<i64: 32, 64>}, {pipeline_mode = #tpu.pipeline_mode<synchronous>, transform_indices = @transform_1, window_bounds = array<i64: 64, 128>}, {pipeline_mode = #tpu.pipeline_mode<synchronous>, transform_indices = @transform_2, window_bounds = array<i64: 128, 128>}, {pipeline_mode = #tpu.pipeline_mode<synchronous>, transform_indices = @transform_3, window_bounds = array<i64: 128, 128>}, {pipeline_mode = #tpu.pipeline_mode<synchronous>, transform_indices = @transform_4, window_bounds = array<i64: 128, 128>}, {pipeline_mode = #tpu.pipeline_mode<synchronous>, transform_indices = @transform_5, window_bounds = array<i64: 128, 128>}, {pipeline_mode = #tpu.pipeline_mode<synchronous>, transform_indices = @transform_6, window_bounds = array<i64: 128, 128>}, {pipeline_mode = #tpu.pipeline_mode<synchronous>, transform_indices = @transform_7, window_bounds = array<i64: 128, 128>}, {pipeline_mode = #tpu.pipeline_mode<synchronous>, transform_indices = @transform_8, window_bounds = array<i64: 128, 128>}, {pipeline_mode = #tpu.pipeline_mode<synchronous>, transform_indices = @transform_9, window_bounds = array<i64: 8, 128>}, {transform_indices = @transform_10, window_bounds = array<i64: 32, 128>}, {transform_indices = @transform_11, window_bounds = array<i64: 32, 128>}]} {
    %c0 = arith.constant 0 : index
    %c0_0 = arith.constant 0 : index
    %0 = vector.load %arg10[%c0, %c0_0] : memref<8x128xf32, #tpu.memory_space<vmem>>, vector<8x128xf32>
    %c0_1 = arith.constant 0 : index
    %c0_2 = arith.constant 0 : index
    %1 = vector.load %arg1[%c0_1, %c0_2] : memref<32x64xf32, #tpu.memory_space<vmem>>, vector<32x64xf32>
    %c0_3 = arith.constant 0 : index
    %c0_4 = arith.constant 0 : index
    %2 = vector.load %arg2[%c0_3, %c0_4] : memref<64x128xf32, #tpu.memory_space<vmem>>, vector<64x128xf32>
    %cst = arith.constant dense<0.000000e+00> : vector<32x128xf32>
    %3 = tpu.matmul %1, %2, %cst {dimension_numbers = #tpu.dot_dimension_numbers<[1], [0], [0], [1], [0, 0, 1, 1], [], []>} : vector<32x64xf32>, vector<64x128xf32>, vector<32x128xf32> -> vector<32x128xf32>
    %4 = vector.extract_strided_slice %0 {offsets = [0, 0], sizes = [1, 128], strides = [1, 1]} : vector<8x128xf32> to vector<1x128xf32>
    %5 = vector.broadcast %4 : vector<1x128xf32> to vector<32x128xf32>
    %6 = arith.addf %3, %5 : vector<32x128xf32>
    %cst_5 = arith.constant 0.000000e+00 : f32
    %7 = vector.broadcast %cst_5 : f32 to vector<32x128xf32>
    %8 = arith.maximumf %6, %7 : vector<32x128xf32>
    %c0_6 = arith.constant 0 : index
    %c0_7 = arith.constant 0 : index
    %9 = vector.load %arg3[%c0_6, %c0_7] : memref<128x128xf32, #tpu.memory_space<vmem>>, vector<128x128xf32>
    %cst_8 = arith.constant dense<0.000000e+00> : vector<32x128xf32>
    %10 = tpu.matmul %8, %9, %cst_8 {dimension_numbers = #tpu.dot_dimension_numbers<[1], [0], [0], [1], [0, 0, 1, 1], [], []>} : vector<32x128xf32>, vector<128x128xf32>, vector<32x128xf32> -> vector<32x128xf32>
    %11 = vector.extract_strided_slice %0 {offsets = [1, 0], sizes = [1, 128], strides = [1, 1]} : vector<8x128xf32> to vector<1x128xf32>
    %12 = vector.broadcast %11 : vector<1x128xf32> to vector<32x128xf32>
    %13 = arith.addf %10, %12 : vector<32x128xf32>
    %cst_9 = arith.constant 0.000000e+00 : f32
    %14 = vector.broadcast %cst_9 : f32 to vector<32x128xf32>
    %15 = arith.maximumf %13, %14 : vector<32x128xf32>
    %c0_10 = arith.constant 0 : index
    %c0_11 = arith.constant 0 : index
    %16 = vector.load %arg4[%c0_10, %c0_11] : memref<128x128xf32, #tpu.memory_space<vmem>>, vector<128x128xf32>
    %cst_12 = arith.constant dense<0.000000e+00> : vector<32x128xf32>
    %17 = tpu.matmul %15, %16, %cst_12 {dimension_numbers = #tpu.dot_dimension_numbers<[1], [0], [0], [1], [0, 0, 1, 1], [], []>} : vector<32x128xf32>, vector<128x128xf32>, vector<32x128xf32> -> vector<32x128xf32>
    %18 = vector.extract_strided_slice %0 {offsets = [2, 0], sizes = [1, 128], strides = [1, 1]} : vector<8x128xf32> to vector<1x128xf32>
    %19 = vector.broadcast %18 : vector<1x128xf32> to vector<32x128xf32>
    %20 = arith.addf %17, %19 : vector<32x128xf32>
    %cst_13 = arith.constant 0.000000e+00 : f32
    %21 = vector.broadcast %cst_13 : f32 to vector<32x128xf32>
    %22 = arith.maximumf %20, %21 : vector<32x128xf32>
    %c0_14 = arith.constant 0 : index
    %c0_15 = arith.constant 0 : index
    %23 = vector.load %arg5[%c0_14, %c0_15] : memref<128x128xf32, #tpu.memory_space<vmem>>, vector<128x128xf32>
    %cst_16 = arith.constant dense<0.000000e+00> : vector<32x128xf32>
    %24 = tpu.matmul %22, %23, %cst_16 {dimension_numbers = #tpu.dot_dimension_numbers<[1], [0], [0], [1], [0, 0, 1, 1], [], []>} : vector<32x128xf32>, vector<128x128xf32>, vector<32x128xf32> -> vector<32x128xf32>
    %25 = vector.extract_strided_slice %0 {offsets = [3, 0], sizes = [1, 128], strides = [1, 1]} : vector<8x128xf32> to vector<1x128xf32>
    %26 = vector.broadcast %25 : vector<1x128xf32> to vector<32x128xf32>
    %27 = arith.addf %24, %26 : vector<32x128xf32>
    %c0_17 = arith.constant 0 : index
    %c0_18 = arith.constant 0 : index
    %28 = vector.load %arg12[%c0_17, %c0_18] : memref<32x128xf32, #tpu.memory_space<vmem>>, vector<32x128xf32>
    tpu.vector_store %arg12[%c0_17, %c0_18], %27 {strides = array<i32>} : memref<32x128xf32, #tpu.memory_space<vmem>>, vector<32x128xf32>,
    %c0_19 = arith.constant 0 : index
    %c0_20 = arith.constant 0 : index
    %29 = vector.load %arg6[%c0_19, %c0_20] : memref<128x128xf32, #tpu.memory_space<vmem>>, vector<128x128xf32>
    %cst_21 = arith.constant dense<0.000000e+00> : vector<32x128xf32>
    %30 = tpu.matmul %27, %29, %cst_21 {dimension_numbers = #tpu.dot_dimension_numbers<[1], [0], [0], [1], [0, 0, 1, 1], [], []>} : vector<32x128xf32>, vector<128x128xf32>, vector<32x128xf32> -> vector<32x128xf32>
    %31 = vector.extract_strided_slice %0 {offsets = [4, 0], sizes = [1, 128], strides = [1, 1]} : vector<8x128xf32> to vector<1x128xf32>
    %32 = vector.broadcast %31 : vector<1x128xf32> to vector<32x128xf32>
    %33 = arith.addf %30, %32 : vector<32x128xf32>
    %cst_22 = arith.constant 0.000000e+00 : f32
    %34 = vector.broadcast %cst_22 : f32 to vector<32x128xf32>
    %35 = arith.maximumf %33, %34 : vector<32x128xf32>
    %c0_23 = arith.constant 0 : index
    %c0_24 = arith.constant 0 : index
    %36 = vector.load %arg7[%c0_23, %c0_24] : memref<128x128xf32, #tpu.memory_space<vmem>>, vector<128x128xf32>
    %cst_25 = arith.constant dense<0.000000e+00> : vector<32x128xf32>
    %37 = tpu.matmul %35, %36, %cst_25 {dimension_numbers = #tpu.dot_dimension_numbers<[1], [0], [0], [1], [0, 0, 1, 1], [], []>} : vector<32x128xf32>, vector<128x128xf32>, vector<32x128xf32> -> vector<32x128xf32>
    %38 = vector.extract_strided_slice %0 {offsets = [5, 0], sizes = [1, 128], strides = [1, 1]} : vector<8x128xf32> to vector<1x128xf32>
    %39 = vector.broadcast %38 : vector<1x128xf32> to vector<32x128xf32>
    %40 = arith.addf %37, %39 : vector<32x128xf32>
    %cst_26 = arith.constant 0.000000e+00 : f32
    %41 = vector.broadcast %cst_26 : f32 to vector<32x128xf32>
    %42 = arith.maximumf %40, %41 : vector<32x128xf32>
    %c0_27 = arith.constant 0 : index
    %c0_28 = arith.constant 0 : index
    %43 = vector.load %arg8[%c0_27, %c0_28] : memref<128x128xf32, #tpu.memory_space<vmem>>, vector<128x128xf32>
    %cst_29 = arith.constant dense<0.000000e+00> : vector<32x128xf32>
    %44 = tpu.matmul %42, %43, %cst_29 {dimension_numbers = #tpu.dot_dimension_numbers<[1], [0], [0], [1], [0, 0, 1, 1], [], []>} : vector<32x128xf32>, vector<128x128xf32>, vector<32x128xf32> -> vector<32x128xf32>
    %45 = vector.extract_strided_slice %0 {offsets = [6, 0], sizes = [1, 128], strides = [1, 1]} : vector<8x128xf32> to vector<1x128xf32>
    %46 = vector.broadcast %45 : vector<1x128xf32> to vector<32x128xf32>
    %47 = arith.addf %44, %46 : vector<32x128xf32>
    %cst_30 = arith.constant 0.000000e+00 : f32
    %48 = vector.broadcast %cst_30 : f32 to vector<32x128xf32>
    %49 = arith.maximumf %47, %48 : vector<32x128xf32>
    %c0_31 = arith.constant 0 : index
    %c0_32 = arith.constant 0 : index
    %50 = vector.load %arg9[%c0_31, %c0_32] : memref<128x128xf32, #tpu.memory_space<vmem>>, vector<128x128xf32>
    %cst_33 = arith.constant dense<0.000000e+00> : vector<32x128xf32>
    %51 = tpu.matmul %49, %50, %cst_33 {dimension_numbers = #tpu.dot_dimension_numbers<[1], [0], [0], [1], [0, 0, 1, 1], [], []>} : vector<32x128xf32>, vector<128x128xf32>, vector<32x128xf32> -> vector<32x128xf32>
    %52 = vector.extract_strided_slice %0 {offsets = [7, 0], sizes = [1, 128], strides = [1, 1]} : vector<8x128xf32> to vector<1x128xf32>
    %53 = vector.broadcast %52 : vector<1x128xf32> to vector<32x128xf32>
    %54 = arith.addf %51, %53 : vector<32x128xf32>
    %c0_34 = arith.constant 0 : index
    %c0_35 = arith.constant 0 : index
    %55 = vector.load %arg11[%c0_34, %c0_35] : memref<32x128xf32, #tpu.memory_space<vmem>>, vector<32x128xf32>
    tpu.vector_store %arg11[%c0_34, %c0_35], %54 {strides = array<i32>} : memref<32x128xf32, #tpu.memory_space<vmem>>, vector<32x128xf32>,
    return
  }
  func.func @transform_0(%arg0: i32) -> (i32, i32) {
    %c0_i32 = arith.constant 0 : i32
    %c0_i32_0 = arith.constant 0 : i32
    return %arg0, %c0_i32 : i32, i32
  }
  func.func @transform_1(%arg0: i32) -> (i32, i32) {
    %c0_i32 = arith.constant 0 : i32
    %c0_i32_0 = arith.constant 0 : i32
    %c0_i32_1 = arith.constant 0 : i32
    return %c0_i32, %c0_i32_0 : i32, i32
  }
  func.func @transform_2(%arg0: i32) -> (i32, i32) {
    %c0_i32 = arith.constant 0 : i32
    %c0_i32_0 = arith.constant 0 : i32
    %c0_i32_1 = arith.constant 0 : i32
    return %c0_i32, %c0_i32_0 : i32, i32
  }
  func.func @transform_3(%arg0: i32) -> (i32, i32) {
    %c0_i32 = arith.constant 0 : i32
    %c0_i32_0 = arith.constant 0 : i32
    %c0_i32_1 = arith.constant 0 : i32
    return %c0_i32, %c0_i32_0 : i32, i32
  }
  func.func @transform_4(%arg0: i32) -> (i32, i32) {
    %c0_i32 = arith.constant 0 : i32
    %c0_i32_0 = arith.constant 0 : i32
    %c0_i32_1 = arith.constant 0 : i32
    return %c0_i32, %c0_i32_0 : i32, i32
  }
  func.func @transform_5(%arg0: i32) -> (i32, i32) {
    %c0_i32 = arith.constant 0 : i32
    %c0_i32_0 = arith.constant 0 : i32
    %c0_i32_1 = arith.constant 0 : i32
    return %c0_i32, %c0_i32_0 : i32, i32
  }
  func.func @transform_6(%arg0: i32) -> (i32, i32) {
    %c0_i32 = arith.constant 0 : i32
    %c0_i32_0 = arith.constant 0 : i32
    %c0_i32_1 = arith.constant 0 : i32
    return %c0_i32, %c0_i32_0 : i32, i32
  }
  func.func @transform_7(%arg0: i32) -> (i32, i32) {
    %c0_i32 = arith.constant 0 : i32
    %c0_i32_0 = arith.constant 0 : i32
    %c0_i32_1 = arith.constant 0 : i32
    return %c0_i32, %c0_i32_0 : i32, i32
  }
  func.func @transform_8(%arg0: i32) -> (i32, i32) {
    %c0_i32 = arith.constant 0 : i32
    %c0_i32_0 = arith.constant 0 : i32
    %c0_i32_1 = arith.constant 0 : i32
    return %c0_i32, %c0_i32_0 : i32, i32
  }
  func.func @transform_9(%arg0: i32) -> (i32, i32) {
    %c0_i32 = arith.constant 0 : i32
    %c0_i32_0 = arith.constant 0 : i32
    %c0_i32_1 = arith.constant 0 : i32
    return %c0_i32, %c0_i32_0 : i32, i32
  }
  func.func @transform_10(%arg0: i32) -> (i32, i32) {
    %c0_i32 = arith.constant 0 : i32
    %c0_i32_0 = arith.constant 0 : i32
    return %arg0, %c0_i32 : i32, i32
  }
  func.func @transform_11(%arg0: i32) -> (i32, i32) {
    %c0_i32 = arith.constant 0 : i32
    %c0_i32_0 = arith.constant 0 : i32
    return %arg0, %c0_i32 : i32, i32
  }
}

</mosaic_0001>

<llo_original>
// kernel: edesc_ae_forward.1
$region0: #{edesc_ae_forward.1}
  #allocation0 [shape = 'u32[]', space=smem, size = 0x4, offset = 0x4, fixed_abs, tag = 'smem constant byte address 0x4 - core index']
  #allocation1 [shape = 'u32[144,128]{1,0:T(1,128)}', space=vmem, size = 0x12000, scoped, tag = 'internal scratch']
  %s0 = inlined_call_operand.hbm [shape: f32[32,64], index: 0, kind: input, shape index: {}]
  %s1 = inlined_call_operand.hbm [shape: f32[64,128], index: 1, kind: input, shape index: {}]
  %s2 = inlined_call_operand.hbm [shape: f32[128,128], index: 2, kind: input, shape index: {}]
  %s3 = inlined_call_operand.hbm [shape: f32[128,128], index: 3, kind: input, shape index: {}]
  %s4 = inlined_call_operand.hbm [shape: f32[128,128], index: 4, kind: input, shape index: {}]
  %s5 = inlined_call_operand.hbm [shape: f32[128,128], index: 5, kind: input, shape index: {}]
  %s6 = inlined_call_operand.hbm [shape: f32[128,128], index: 6, kind: input, shape index: {}]
  %s7 = inlined_call_operand.hbm [shape: f32[128,128], index: 7, kind: input, shape index: {}]
  %s8 = inlined_call_operand.hbm [shape: f32[128,128], index: 8, kind: input, shape index: {}]
  %s9 = inlined_call_operand.vmem [shape: f32[8,128], index: 9, kind: input, shape index: {}]
  %s10 = inlined_call_operand.hbm [shape: f32[32,128], index: 10, kind: output, shape index: {0}]
  %s11 = inlined_call_operand.vmem [shape: f32[32,128], index: 11, kind: output, shape index: {1}]
  %12 = xla_tuple %s10, %s11
  %s13 = sld [smem:[#allocation0]]
  $region94: #{edesc_ae_forward.1} parent=0
    _
  %s15 = ssub.s32 1, %s13
  %s16 = scalar_select 0, %s15, %s13
  $region1: #{edesc_ae_forward.1} parent=0
    #allocation2 [shape = 'u8[16384]{0}', space=vmem, size = 0x4000, scoped, tag = 'input window, operand 0, single buffered']
    #allocation3 [shape = 's32[1]{0}', space=sflag, size = 0x4, scoped, tag = 'scoped memory for edesc_ae_forward.1']
    #allocation4 [shape = 's32[1]{0}', space=sflag, size = 0x4, scoped, tag = 'scoped memory for edesc_ae_forward.1']
    #allocation5 [shape = 'u8[32768]{0}', space=vmem, size = 0x8000, scoped, tag = 'input window, operand 1, single buffered']
    #allocation6 [shape = 's32[1]{0}', space=sflag, size = 0x4, scoped, tag = 'scoped memory for edesc_ae_forward.1']
    #allocation7 [shape = 'u8[65536]{0}', space=vmem, size = 0x10000, scoped, tag = 'input window, operand 2, single buffered']
    #allocation8 [shape = 'u8[65536]{0}', space=vmem, size = 0x10000, scoped, tag = 'input window, operand 3, single buffered']
    #allocation9 [shape = 's32[1]{0}', space=sflag, size = 0x4, scoped, tag = 'scoped memory for edesc_ae_forward.1']
    #allocation10 [shape = 'u8[65536]{0}', space=vmem, size = 0x10000, scoped, tag = 'input window, operand 4, single buffered']
    #allocation11 [shape = 'u8[65536]{0}', space=vmem, size = 0x10000, scoped, tag = 'input window, operand 5, single buffered']
    #allocation12 [shape = 's32[1]{0}', space=sflag, size = 0x4, scoped, tag = 'scoped memory for edesc_ae_forward.1']
    #allocation13 [shape = 'u8[65536]{0}', space=vmem, size = 0x10000, scoped, tag = 'input window, operand 6, single buffered']
    #allocation14 [shape = 'u8[65536]{0}', space=vmem, size = 0x10000, scoped, tag = 'input window, operand 7, single buffered']
    #allocation15 [shape = 's32[1]{0}', space=sflag, size = 0x4, scoped, tag = 'scoped memory for edesc_ae_forward.1']
    #allocation16 [shape = 'u8[65536]{0}', space=vmem, size = 0x10000, scoped, tag = 'input window, operand 8, single buffered']
    #allocation17 [shape = 'u8[16384]{0}', space=vmem, size = 0x4000, scoped, tag = 'output window, operand 0, single buffered']
    %17 = vsyncpa [#allocation3], 0
    %18 = vsyncpa [#allocation6], 0
    %19 = vsyncpa [#allocation9], 0
    %20 = vsyncpa [#allocation12], 0
    %21 = vsyncpa [#allocation15], 0
    %22 = vsyncpa [#allocation4], 0
    // Predicated region
    $region2: #{edesc_ae_forward.1} parent=1 // pred_check
      _
    $region3: #{edesc_ae_forward.1} parent=1 // pred_check_branch
      %24 = sbr.rel (0) target = $region5
    $region4: #{edesc_ae_forward.1} parent=1 // pred_region
      %s26 = ssub.s32 512, 512
      %27 = vsyncadd [#allocation3], %s26
      %s28 = sshll.u32 [#allocation2], 4
      %s29 = int_to_ptr.vmem [resolvable:$true] %s28
      %34 = dma.hbm_to_vmem [thread:$0]  %s0, 512, %s29, [#allocation3], 128, 128, 8
    $region5: #{edesc_ae_forward.1} parent=1 // pred_fallthru
      _
    // Predicated region
    $region6: #{edesc_ae_forward.1} parent=1 // pred_check
      _
    $region7: #{edesc_ae_forward.1} parent=1 // pred_check_branch
      %36 = sbr.rel (0) target = $region9
    $region8: #{edesc_ae_forward.1} parent=1 // pred_region
      %s38 = ssub.s32 1024, 1024
      %39 = vsyncadd [#allocation6], %s38
      %s40 = sshll.u32 [#allocation5], 4
      %s41 = int_to_ptr.vmem [resolvable:$true] %s40
      %46 = dma.hbm_to_vmem [thread:$0]  %s1, 1024, %s41, [#allocation6], 128, 128, 8
    $region9: #{edesc_ae_forward.1} parent=1 // pred_fallthru
      _
    // Predicated region
    $region10: #{edesc_ae_forward.1} parent=1 // pred_check
      _
    $region11: #{edesc_ae_forward.1} parent=1 // pred_check_branch
      %48 = sbr.rel (0) target = $region13
    $region12: #{edesc_ae_forward.1} parent=1 // pred_region
      %s50 = ssub.s32 2048, 2048
      %51 = vsyncadd [#allocation6], %s50
      %s52 = sshll.u32 [#allocation7], 4
      %s53 = int_to_ptr.vmem [resolvable:$true] %s52
      %58 = dma.hbm_to_vmem [thread:$0]  %s2, 2048, %s53, [#allocation6], 128, 128, 8
    $region13: #{edesc_ae_forward.1} parent=1 // pred_fallthru
      _
    // Predicated region
    $region14: #{edesc_ae_forward.1} parent=1 // pred_check
      _
    $region15: #{edesc_ae_forward.1} parent=1 // pred_check_branch
      %60 = sbr.rel (0) target = $region17
    $region16: #{edesc_ae_forward.1} parent=1 // pred_region
      %s62 = ssub.s32 2048, 2048
      %63 = vsyncadd [#allocation9], %s62
      %s64 = sshll.u32 [#allocation8], 4
      %s65 = int_to_ptr.vmem [resolvable:$true] %s64
      %70 = dma.hbm_to_vmem [thread:$0]  %s3, 2048, %s65, [#allocation9], 128, 128, 8
    $region17: #{edesc_ae_forward.1} parent=1 // pred_fallthru
      _
    // Predicated region
    $region18: #{edesc_ae_forward.1} parent=1 // pred_check
      _
    $region19: #{edesc_ae_forward.1} parent=1 // pred_check_branch
      %72 = sbr.rel (0) target = $region21
    $region20: #{edesc_ae_forward.1} parent=1 // pred_region
      %s74 = ssub.s32 2048, 2048
      %75 = vsyncadd [#allocation9], %s74
      %s76 = sshll.u32 [#allocation10], 4
      %s77 = int_to_ptr.vmem [resolvable:$true] %s76
      %82 = dma.hbm_to_vmem [thread:$0]  %s4, 2048, %s77, [#allocation9], 128, 128, 8
    $region21: #{edesc_ae_forward.1} parent=1 // pred_fallthru
      _
    // Predicated region
    $region22: #{edesc_ae_forward.1} parent=1 // pred_check
      _
    $region23: #{edesc_ae_forward.1} parent=1 // pred_check_branch
      %84 = sbr.rel (0) target = $region25
    $region24: #{edesc_ae_forward.1} parent=1 // pred_region
      %s86 = ssub.s32 2048, 2048
      %87 = vsyncadd [#allocation12], %s86
      %s88 = sshll.u32 [#allocation11], 4
      %s89 = int_to_ptr.vmem [resolvable:$true] %s88
      %94 = dma.hbm_to_vmem [thread:$0]  %s5, 2048, %s89, [#allocation12], 128, 128, 8
    $region25: #{edesc_ae_forward.1} parent=1 // pred_fallthru
      _
    // Predicated region
    $region26: #{edesc_ae_forward.1} parent=1 // pred_check
      _
    $region27: #{edesc_ae_forward.1} parent=1 // pred_check_branch
      %96 = sbr.rel (0) target = $region29
    $region28: #{edesc_ae_forward.1} parent=1 // pred_region
      %s98 = ssub.s32 2048, 2048
      %99 = vsyncadd [#allocation12], %s98
      %s100 = sshll.u32 [#allocation13], 4
      %s101 = int_to_ptr.vmem [resolvable:$true] %s100
      %106 = dma.hbm_to_vmem [thread:$0]  %s6, 2048, %s101, [#allocation12], 128, 128, 8
    $region29: #{edesc_ae_forward.1} parent=1 // pred_fallthru
      _
    // Predicated region
    $region30: #{edesc_ae_forward.1} parent=1 // pred_check
      _
    $region31: #{edesc_ae_forward.1} parent=1 // pred_check_branch
      %108 = sbr.rel (0) target = $region33
    $region32: #{edesc_ae_forward.1} parent=1 // pred_region
      %s110 = ssub.s32 2048, 2048
      %111 = vsyncadd [#allocation15], %s110
      %s112 = sshll.u32 [#allocation14], 4
      %s113 = int_to_ptr.vmem [resolvable:$true] %s112
      %118 = dma.hbm_to_vmem [thread:$0]  %s7, 2048, %s113, [#allocation15], 128, 128, 8
    $region33: #{edesc_ae_forward.1} parent=1 // pred_fallthru
      _
    // Predicated region
    $region34: #{edesc_ae_forward.1} parent=1 // pred_check
      _
    $region35: #{edesc_ae_forward.1} parent=1 // pred_check_branch
      %120 = sbr.rel (0) target = $region37
    $region36: #{edesc_ae_forward.1} parent=1 // pred_region
      %s122 = ssub.s32 2048, 2048
      %123 = vsyncadd [#allocation15], %s122
      %s124 = sshll.u32 [#allocation16], 4
      %s125 = int_to_ptr.vmem [resolvable:$true] %s124
      %130 = dma.hbm_to_vmem [thread:$0]  %s8, 2048, %s125, [#allocation15], 128, 128, 8
    $region37: #{edesc_ae_forward.1} parent=1 // pred_fallthru
      _
    // Predicated region
    $region38: #{edesc_ae_forward.1} parent=1 // pred_check
      _
    $region39: #{edesc_ae_forward.1} parent=1 // pred_check_branch
      %132 = sbr.rel (0) target = $region41
    $region40: #{edesc_ae_forward.1} parent=1 // pred_region
      _
    $region41: #{edesc_ae_forward.1} parent=1 // pred_fallthru
      _
    // Predicated region
    $region42: #{edesc_ae_forward.1} parent=1 // pred_check
      _
    $region43: #{edesc_ae_forward.1} parent=1 // pred_check_branch
      %134 = sbr.rel (0) target = $region45
    $region44: #{edesc_ae_forward.1} parent=1 // pred_region
      %135 = dma.done [#allocation3], 512
    $region45: #{edesc_ae_forward.1} parent=1 // pred_fallthru
      _
    // Predicated region
    $region46: #{edesc_ae_forward.1} parent=1 // pred_check
      _
    $region47: #{edesc_ae_forward.1} parent=1 // pred_check_branch
      %137 = sbr.rel (0) target = $region49
    $region48: #{edesc_ae_forward.1} parent=1 // pred_region
      %138 = dma.done [#allocation6], 1024
    $region49: #{edesc_ae_forward.1} parent=1 // pred_fallthru
      _
    // Predicated region
    $region50: #{edesc_ae_forward.1} parent=1 // pred_check
      _
    $region51: #{edesc_ae_forward.1} parent=1 // pred_check_branch
      %140 = sbr.rel (0) target = $region53
    $region52: #{edesc_ae_forward.1} parent=1 // pred_region
      %141 = dma.done [#allocation6], 2048
    $region53: #{edesc_ae_forward.1} parent=1 // pred_fallthru
      _
    // Predicated region
    $region54: #{edesc_ae_forward.1} parent=1 // pred_check
      _
    $region55: #{edesc_ae_forward.1} parent=1 // pred_check_branch
      %143 = sbr.rel (0) target = $region57
    $region56: #{edesc_ae_forward.1} parent=1 // pred_region
      %144 = dma.done [#allocation9], 2048
    $region57: #{edesc_ae_forward.1} parent=1 // pred_fallthru
      _
    // Predicated region
    $region58: #{edesc_ae_forward.1} parent=1 // pred_check
      _
    $region59: #{edesc_ae_forward.1} parent=1 // pred_check_branch
      %146 = sbr.rel (0) target = $region61
    $region60: #{edesc_ae_forward.1} parent=1 // pred_region
      %147 = dma.done [#allocation9], 2048
    $region61: #{edesc_ae_forward.1} parent=1 // pred_fallthru
      _
    // Predicated region
    $region62: #{edesc_ae_forward.1} parent=1 // pred_check
      _
    $region63: #{edesc_ae_forward.1} parent=1 // pred_check_branch
      %149 = sbr.rel (0) target = $region65
    $region64: #{edesc_ae_forward.1} parent=1 // pred_region
      %150 = dma.done [#allocation12], 2048
    $region65: #{edesc_ae_forward.1} parent=1 // pred_fallthru
      _
    // Predicated region
    $region66: #{edesc_ae_forward.1} parent=1 // pred_check
      _
    $region67: #{edesc_ae_forward.1} parent=1 // pred_check_branch
      %152 = sbr.rel (0) target = $region69
    $region68: #{edesc_ae_forward.1} parent=1 // pred_region
      %153 = dma.done [#allocation12], 2048
    $region69: #{edesc_ae_forward.1} parent=1 // pred_fallthru
      _
    // Predicated region
    $region70: #{edesc_ae_forward.1} parent=1 // pred_check
      _
    $region71: #{edesc_ae_forward.1} parent=1 // pred_check_branch
      %155 = sbr.rel (0) target = $region73
    $region72: #{edesc_ae_forward.1} parent=1 // pred_region
      %156 = dma.done [#allocation15], 2048
    $region73: #{edesc_ae_forward.1} parent=1 // pred_fallthru
      _
    // Predicated region
    $region74: #{edesc_ae_forward.1} parent=1 // pred_check
      _
    $region75: #{edesc_ae_forward.1} parent=1 // pred_check_branch
      %158 = sbr.rel (0) target = $region77
    $region76: #{edesc_ae_forward.1} parent=1 // pred_region
      %159 = dma.done [#allocation15], 2048
    $region77: #{edesc_ae_forward.1} parent=1 // pred_fallthru
      _
    %v160 = vld [vmem:[%s9] sm:$0xff]
    %v161 = vld [vmem:[#allocation2] sm:$0xff]
    %v162 = vld [vmem:[#allocation2 + $0x8] sm:$0xff]
    %v163 = vld [vmem:[#allocation2 + $0x10] sm:$0xff]
    %v164 = vld [vmem:[#allocation2 + $0x18] sm:$0xff]
    %v165 = vld [vmem:[#allocation5] sm:$0xff]
    %v166 = vld [vmem:[#allocation5 + $0x8] sm:$0xff]
    %v167 = vld [vmem:[#allocation5 + $0x10] sm:$0xff]
    %v168 = vld [vmem:[#allocation5 + $0x18] sm:$0xff]
    %v169 = vld [vmem:[#allocation5 + $0x20] sm:$0xff]
    %v170 = vld [vmem:[#allocation5 + $0x28] sm:$0xff]
    %v171 = vld [vmem:[#allocation5 + $0x30] sm:$0xff]
    %v172 = vld [vmem:[#allocation5 + $0x38] sm:$0xff]
    %v173 = vlaneseq
    %v174 = vshrl.u32 %v173, 7
    %v175 = vsub.s32 0, %v174
    %v176 = vrot.slane %v160, %v175
    %vm177 = vcmask 523264
    %v179 = vsel %vm177, %v161, 0
    %v182 = vsel %vm177, %v162, 0
    %v185 = vsel %vm177, %v163, 0
    %v188 = vsel %vm177, %v164, 0
    %190 = vmatprep.subr.mxu0 0.0
    %191 = vmatpush1.msra.mxu0 %v165
    %192 = vmatprep.subr.mxu0 0.0
    %193 = vmatpush1.msra.mxu0 %v166
    %194 = vmatprep.subr.mxu0 0.0
    %195 = vmatpush1.msra.mxu0 %v167
    %196 = vmatprep.subr.mxu0 0.0
    %197 = vmatpush1.msra.mxu0 %v168
    %198 = vmatprep.subr.mxu0 0.0
    %199 = vmatpush1.msra.mxu0 %v169
    %200 = vmatprep.subr.mxu0 0.0
    %201 = vmatpush1.msra.mxu0 %v170
    %202 = vmatprep.subr.mxu0 0.0
    %203 = vmatpush1.msra.mxu0 %v171
    %204 = vmatprep.subr.mxu0 0.0
    %205 = vmatpush1.msra.mxu0 %v172
    %206 = vmatprep.subr.mxu0 0.0
    %207 = vmatpush1.msra.mxu0 0.0
    %208 = vmatprep.subr.mxu0 0.0
    %209 = vmatpush1.msra.mxu0 0.0
    %210 = vmatprep.subr.mxu0 0.0
    %211 = vmatpush1.msra.mxu0 0.0
    %212 = vmatprep.subr.mxu0 0.0
    %213 = vmatpush1.msra.mxu0 0.0
    %214 = vmatprep.subr.mxu0 0.0
    %215 = vmatpush1.msra.mxu0 0.0
    %216 = vmatprep.subr.mxu0 0.0
    %217 = vmatpush1.msra.mxu0 0.0
    %218 = vmatprep.subr.mxu0 0.0
    %219 = vmatpush1.msra.mxu0 0.0
    %220 = vmatprep.subr.mxu0 0.0
    %221 = vmatpush1.msra.mxu0 0.0
    %222 = vmatprep.subr.mxu0 0.0
    %223 = vmatpush1.msra.mxu0 0.0
    %224 = vmatprep.subr.mxu0 0.0
    %225 = vmatpush1.msra.mxu0 0.0
    %226 = vmatprep.subr.mxu0 0.0
    %227 = vmatpush1.msra.mxu0 0.0
    %228 = vmatprep.subr.mxu0 0.0
    %229 = vmatpush1.msra.mxu0 0.0
    %230 = vmatprep.subr.mxu0 0.0
    %231 = vmatpush1.msra.mxu0 0.0
    %232 = vmatprep.subr.mxu0 0.0
    %233 = vmatpush1.msra.mxu0 0.0
    %234 = vmatprep.subr.mxu0 0.0
    %235 = vmatpush1.msra.mxu0 0.0
    %236 = vmatprep.subr.mxu0 0.0
    %237 = vmatpush1.msra.mxu0 0.0
    %238 = vmatprep.subr.mxu0 0.0
    %239 = vmatpush1.msra.mxu0 0.0
    %240 = vmatprep.subr.mxu0 0.0
    %241 = vmatpush1.msra.mxu0 0.0
    %242 = vmatprep.subr.mxu0 0.0
    %243 = vmatpush1.msra.mxu0 0.0
    %244 = vmatprep.subr.mxu0 0.0
    %245 = vmatpush1.msra.mxu0 0.0
    %246 = vmatprep.subr.mxu0 0.0
    %247 = vmatpush1.msra.mxu0 0.0
    %248 = vmatprep.subr.mxu0 0.0
    %249 = vmatpush1.msra.mxu0 0.0
    %250 = vmatprep.subr.mxu0 0.0
    %251 = vmatpush1.msra.mxu0 0.0
    %252 = vmatprep.subr.mxu0 0.0
    %253 = vmatpush1.msra.mxu0 0.0
    %254 = vmatprep.mubr.f32.mxu0 0.0
    %255 = vmatmul.mubr.f32.gmra.mrb[0].mxu0 %v179
    %v256 = vpop.f32.mrb[0].mxu0
    %v257 = vadd.f32 %v176, %v256
    %v258 = vpop.f32.mrb[0].mxu0
    %259 = vmatprep.mubr.f32.mxu0 0.0
    %260 = vmatmul.mubr.f32.gmra.mrb[0].mxu0 %v182
    %v261 = vpop.f32.mrb[0].mxu0
    %v262 = vadd.f32 %v176, %v261
    %v263 = vpop.f32.mrb[0].mxu0
    %264 = vmatprep.mubr.f32.mxu0 0.0
    %265 = vmatmul.mubr.f32.gmra.mrb[0].mxu0 %v185
    %v266 = vpop.f32.mrb[0].mxu0
    %v267 = vadd.f32 %v176, %v266
    %v268 = vpop.f32.mrb[0].mxu0
    %269 = vmatprep.mubr.f32.mxu0 0.0
    %270 = vmatmul.mubr.f32.gmra.mrb[0].mxu0 %v188
    %v271 = vpop.f32.mrb[0].mxu0
    %v272 = vadd.f32 %v176, %v271
    %v273 = vpop.f32.mrb[0].mxu0
    %274 = vdwg.mxu0
    %v275 = vmax.f32 %v257, 0.0
    %v276 = vmax.f32 %v262, 0.0
    %v277 = vmax.f32 %v267, 0.0
    %v278 = vmax.f32 %v272, 0.0
    %v279 = vld [vmem:[#allocation7] sm:$0xff]
    %v280 = vld [vmem:[#allocation7 + $0x8] sm:$0xff]
    %v281 = vld [vmem:[#allocation7 + $0x10] sm:$0xff]
    %v282 = vld [vmem:[#allocation7 + $0x18] sm:$0xff]
    %v283 = vld [vmem:[#allocation7 + $0x20] sm:$0xff]
    %v284 = vld [vmem:[#allocation7 + $0x28] sm:$0xff]
    %v285 = vld [vmem:[#allocation7 + $0x30] sm:$0xff]
    %v286 = vld [vmem:[#allocation7 + $0x38] sm:$0xff]
    %v287 = vld [vmem:[#allocation7 + $0x40] sm:$0xff]
    %v288 = vld [vmem:[#allocation7 + $0x48] sm:$0xff]
    %v289 = vld [vmem:[#allocation7 + $0x50] sm:$0xff]
    %v290 = vld [vmem:[#allocation7 + $0x58] sm:$0xff]
    %v291 = vld [vmem:[#allocation7 + $0x60] sm:$0xff]
    %v292 = vld [vmem:[#allocation7 + $0x68] sm:$0xff]
    %v293 = vld [vmem:[#allocation7 + $0x70] sm:$0xff]
    %v294 = vld [vmem:[#allocation7 + $0x78] sm:$0xff]
    %v295 = vlaneseq
    %v296 = vshrl.u32 %v295, 7
    %v297 = vsub.s32 1, %v296
    %v298 = vrot.slane %v160, %v297
    %299 = vmatprep.subr.mxu0 0.0
    %300 = vmatpush1.msra.mxu0 %v279
    %301 = vmatprep.subr.mxu0 0.0
    %302 = vmatpush1.msra.mxu0 %v280
    %303 = vmatprep.subr.mxu0 0.0
    %304 = vmatpush1.msra.mxu0 %v281
    %305 = vmatprep.subr.mxu0 0.0
    %306 = vmatpush1.msra.mxu0 %v282
    %307 = vmatprep.subr.mxu0 0.0
    %308 = vmatpush1.msra.mxu0 %v283
    %309 = vmatprep.subr.mxu0 0.0
    %310 = vmatpush1.msra.mxu0 %v284
    %311 = vmatprep.subr.mxu0 0.0
    %312 = vmatpush1.msra.mxu0 %v285
    %313 = vmatprep.subr.mxu0 0.0
    %314 = vmatpush1.msra.mxu0 %v286
    %315 = vmatprep.subr.mxu0 0.0
    %316 = vmatpush1.msra.mxu0 %v287
    %317 = vmatprep.subr.mxu0 0.0
    %318 = vmatpush1.msra.mxu0 %v288
    %319 = vmatprep.subr.mxu0 0.0
    %320 = vmatpush1.msra.mxu0 %v289
    %321 = vmatprep.subr.mxu0 0.0
    %322 = vmatpush1.msra.mxu0 %v290
    %323 = vmatprep.subr.mxu0 0.0
    %324 = vmatpush1.msra.mxu0 %v291
    %325 = vmatprep.subr.mxu0 0.0
    %326 = vmatpush1.msra.mxu0 %v292
    %327 = vmatprep.subr.mxu0 0.0
    %328 = vmatpush1.msra.mxu0 %v293
    %329 = vmatprep.subr.mxu0 0.0
    %330 = vmatpush1.msra.mxu0 %v294
    %331 = vmatprep.subr.mxu0 0.0
    %332 = vmatpush1.msra.mxu0 0.0
    %333 = vmatprep.subr.mxu0 0.0
    %334 = vmatpush1.msra.mxu0 0.0
    %335 = vmatprep.subr.mxu0 0.0
    %336 = vmatpush1.msra.mxu0 0.0
    %337 = vmatprep.subr.mxu0 0.0
    %338 = vmatpush1.msra.mxu0 0.0
    %339 = vmatprep.subr.mxu0 0.0
    %340 = vmatpush1.msra.mxu0 0.0
    %341 = vmatprep.subr.mxu0 0.0
    %342 = vmatpush1.msra.mxu0 0.0
    %343 = vmatprep.subr.mxu0 0.0
    %344 = vmatpush1.msra.mxu0 0.0
    %345 = vmatprep.subr.mxu0 0.0
    %346 = vmatpush1.msra.mxu0 0.0
    %347 = vmatprep.subr.mxu0 0.0
    %348 = vmatpush1.msra.mxu0 0.0
    %349 = vmatprep.subr.mxu0 0.0
    %350 = vmatpush1.msra.mxu0 0.0
    %351 = vmatprep.subr.mxu0 0.0
    %352 = vmatpush1.msra.mxu0 0.0
    %353 = vmatprep.subr.mxu0 0.0
    %354 = vmatpush1.msra.mxu0 0.0
    %355 = vmatprep.subr.mxu0 0.0
    %356 = vmatpush1.msra.mxu0 0.0
    %357 = vmatprep.subr.mxu0 0.0
    %358 = vmatpush1.msra.mxu0 0.0
    %359 = vmatprep.subr.mxu0 0.0
    %360 = vmatpush1.msra.mxu0 0.0
    %361 = vmatprep.subr.mxu0 0.0
    %362 = vmatpush1.msra.mxu0 0.0
    %363 = vmatprep.mubr.f32.mxu0 0.0
    %364 = vmatmul.mubr.f32.gmra.mrb[0].mxu0 %v275
    %v365 = vpop.f32.mrb[0].mxu0
    %v366 = vadd.f32 %v298, %v365
    %v367 = vpop.f32.mrb[0].mxu0
    %368 = vmatprep.mubr.f32.mxu0 0.0
    %369 = vmatmul.mubr.f32.gmra.mrb[0].mxu0 %v276
    %v370 = vpop.f32.mrb[0].mxu0
    %v371 = vadd.f32 %v298, %v370
    %v372 = vpop.f32.mrb[0].mxu0
    %373 = vmatprep.mubr.f32.mxu0 0.0
    %374 = vmatmul.mubr.f32.gmra.mrb[0].mxu0 %v277
    %v375 = vpop.f32.mrb[0].mxu0
    %v376 = vadd.f32 %v298, %v375
    %v377 = vpop.f32.mrb[0].mxu0
    %378 = vmatprep.mubr.f32.mxu0 0.0
    %379 = vmatmul.mubr.f32.gmra.mrb[0].mxu0 %v278
    %v380 = vpop.f32.mrb[0].mxu0
    %v381 = vadd.f32 %v298, %v380
    %v382 = vpop.f32.mrb[0].mxu0
    %383 = vdwg.mxu0
    %v384 = vmax.f32 %v366, 0.0
    %v385 = vmax.f32 %v371, 0.0
    %v386 = vmax.f32 %v376, 0.0
    %v387 = vmax.f32 %v381, 0.0
    %v388 = vld [vmem:[#allocation8] sm:$0xff]
    %v389 = vld [vmem:[#allocation8 + $0x8] sm:$0xff]
    %v390 = vld [vmem:[#allocation8 + $0x10] sm:$0xff]
    %v391 = vld [vmem:[#allocation8 + $0x18] sm:$0xff]
    %v392 = vld [vmem:[#allocation8 + $0x20] sm:$0xff]
    %v393 = vld [vmem:[#allocation8 + $0x28] sm:$0xff]
    %v394 = vld [vmem:[#allocation8 + $0x30] sm:$0xff]
    %v395 = vld [vmem:[#allocation8 + $0x38] sm:$0xff]
    %v396 = vld [vmem:[#allocation8 + $0x40] sm:$0xff]
    %v397 = vld [vmem:[#allocation8 + $0x48] sm:$0xff]
    %v398 = vld [vmem:[#allocation8 + $0x50] sm:$0xff]
    %v399 = vld [vmem:[#allocation8 + $0x58] sm:$0xff]
    %v400 = vld [vmem:[#allocation8 + $0x60] sm:$0xff]
    %v401 = vld [vmem:[#allocation8 + $0x68] sm:$0xff]
    %v402 = vld [vmem:[#allocation8 + $0x70] sm:$0xff]
    %v403 = vld [vmem:[#allocation8 + $0x78] sm:$0xff]
    %v404 = vlaneseq
    %v405 = vshrl.u32 %v404, 7
    %v406 = vsub.s32 2, %v405
    %v407 = vrot.slane %v160, %v406
    %408 = vmatprep.subr.mxu0 0.0
    %409 = vmatpush1.msra.mxu0 %v388
    %410 = vmatprep.subr.mxu0 0.0
    %411 = vmatpush1.msra.mxu0 %v389
    %412 = vmatprep.subr.mxu0 0.0
    %413 = vmatpush1.msra.mxu0 %v390
    %414 = vmatprep.subr.mxu0 0.0
    %415 = vmatpush1.msra.mxu0 %v391
    %416 = vmatprep.subr.mxu0 0.0
    %417 = vmatpush1.msra.mxu0 %v392
    %418 = vmatprep.subr.mxu0 0.0
    %419 = vmatpush1.msra.mxu0 %v393
    %420 = vmatprep.subr.mxu0 0.0
    %421 = vmatpush1.msra.mxu0 %v394
    %422 = vmatprep.subr.mxu0 0.0
    %423 = vmatpush1.msra.mxu0 %v395
    %424 = vmatprep.subr.mxu0 0.0
    %425 = vmatpush1.msra.mxu0 %v396
    %426 = vmatprep.subr.mxu0 0.0
    %427 = vmatpush1.msra.mxu0 %v397
    %428 = vmatprep.subr.mxu0 0.0
    %429 = vmatpush1.msra.mxu0 %v398
    %430 = vmatprep.subr.mxu0 0.0
    %431 = vmatpush1.msra.mxu0 %v399
    %432 = vmatprep.subr.mxu0 0.0
    %433 = vmatpush1.msra.mxu0 %v400
    %434 = vmatprep.subr.mxu0 0.0
    %435 = vmatpush1.msra.mxu0 %v401
    %436 = vmatprep.subr.mxu0 0.0
    %437 = vmatpush1.msra.mxu0 %v402
    %438 = vmatprep.subr.mxu0 0.0
    %439 = vmatpush1.msra.mxu0 %v403
    %440 = vmatprep.subr.mxu0 0.0
    %441 = vmatpush1.msra.mxu0 0.0
    %442 = vmatprep.subr.mxu0 0.0
    %443 = vmatpush1.msra.mxu0 0.0
    %444 = vmatprep.subr.mxu0 0.0
    %445 = vmatpush1.msra.mxu0 0.0
    %446 = vmatprep.subr.mxu0 0.0
    %447 = vmatpush1.msra.mxu0 0.0
    %448 = vmatprep.subr.mxu0 0.0
    %449 = vmatpush1.msra.mxu0 0.0
    %450 = vmatprep.subr.mxu0 0.0
    %451 = vmatpush1.msra.mxu0 0.0
    %452 = vmatprep.subr.mxu0 0.0
    %453 = vmatpush1.msra.mxu0 0.0
    %454 = vmatprep.subr.mxu0 0.0
    %455 = vmatpush1.msra.mxu0 0.0
    %456 = vmatprep.subr.mxu0 0.0
    %457 = vmatpush1.msra.mxu0 0.0
    %458 = vmatprep.subr.mxu0 0.0
    %459 = vmatpush1.msra.mxu0 0.0
    %460 = vmatprep.subr.mxu0 0.0
    %461 = vmatpush1.msra.mxu0 0.0
    %462 = vmatprep.subr.mxu0 0.0
    %463 = vmatpush1.msra.mxu0 0.0
    %464 = vmatprep.subr.mxu0 0.0
    %465 = vmatpush1.msra.mxu0 0.0
    %466 = vmatprep.subr.mxu0 0.0
    %467 = vmatpush1.msra.mxu0 0.0
    %468 = vmatprep.subr.mxu0 0.0
    %469 = vmatpush1.msra.mxu0 0.0
    %470 = vmatprep.subr.mxu0 0.0
    %471 = vmatpush1.msra.mxu0 0.0
    %472 = vmatprep.mubr.f32.mxu0 0.0
    %473 = vmatmul.mubr.f32.gmra.mrb[0].mxu0 %v384
    %v474 = vpop.f32.mrb[0].mxu0
    %v475 = vadd.f32 %v407, %v474
    %v476 = vpop.f32.mrb[0].mxu0
    %477 = vmatprep.mubr.f32.mxu0 0.0
    %478 = vmatmul.mubr.f32.gmra.mrb[0].mxu0 %v385
    %v479 = vpop.f32.mrb[0].mxu0
    %v480 = vadd.f32 %v407, %v479
    %v481 = vpop.f32.mrb[0].mxu0
    %482 = vmatprep.mubr.f32.mxu0 0.0
    %483 = vmatmul.mubr.f32.gmra.mrb[0].mxu0 %v386
    %v484 = vpop.f32.mrb[0].mxu0
    %v485 = vadd.f32 %v407, %v484
    %v486 = vpop.f32.mrb[0].mxu0
    %487 = vmatprep.mubr.f32.mxu0 0.0
    %488 = vmatmul.mubr.f32.gmra.mrb[0].mxu0 %v387
    %v489 = vpop.f32.mrb[0].mxu0
    %v490 = vadd.f32 %v407, %v489
    %v491 = vpop.f32.mrb[0].mxu0
    %492 = vdwg.mxu0
    %v493 = vmax.f32 %v475, 0.0
    %v494 = vmax.f32 %v480, 0.0
    %v495 = vmax.f32 %v485, 0.0
    %v496 = vmax.f32 %v490, 0.0
    %v497 = vld [vmem:[#allocation10] sm:$0xff]
    %v498 = vld [vmem:[#allocation10 + $0x8] sm:$0xff]
    %v499 = vld [vmem:[#allocation10 + $0x10] sm:$0xff]
    %v500 = vld [vmem:[#allocation10 + $0x18] sm:$0xff]
    %v501 = vld [vmem:[#allocation10 + $0x20] sm:$0xff]
    %v502 = vld [vmem:[#allocation10 + $0x28] sm:$0xff]
    %v503 = vld [vmem:[#allocation10 + $0x30] sm:$0xff]
    %v504 = vld [vmem:[#allocation10 + $0x38] sm:$0xff]
    %v505 = vld [vmem:[#allocation10 + $0x40] sm:$0xff]
    %v506 = vld [vmem:[#allocation10 + $0x48] sm:$0xff]
    %v507 = vld [vmem:[#allocation10 + $0x50] sm:$0xff]
    %v508 = vld [vmem:[#allocation10 + $0x58] sm:$0xff]
    %v509 = vld [vmem:[#allocation10 + $0x60] sm:$0xff]
    %v510 = vld [vmem:[#allocation10 + $0x68] sm:$0xff]
    %v511 = vld [vmem:[#allocation10 + $0x70] sm:$0xff]
    %v512 = vld [vmem:[#allocation10 + $0x78] sm:$0xff]
    %v513 = vlaneseq
    %v514 = vshrl.u32 %v513, 7
    %v515 = vsub.s32 3, %v514
    %v516 = vrot.slane %v160, %v515
    %517 = vmatprep.subr.mxu0 0.0
    %518 = vmatpush1.msra.mxu0 %v497
    %519 = vmatprep.subr.mxu0 0.0
    %520 = vmatpush1.msra.mxu0 %v498
    %521 = vmatprep.subr.mxu0 0.0
    %522 = vmatpush1.msra.mxu0 %v499
    %523 = vmatprep.subr.mxu0 0.0
    %524 = vmatpush1.msra.mxu0 %v500
    %525 = vmatprep.subr.mxu0 0.0
    %526 = vmatpush1.msra.mxu0 %v501
    %527 = vmatprep.subr.mxu0 0.0
    %528 = vmatpush1.msra.mxu0 %v502
    %529 = vmatprep.subr.mxu0 0.0
    %530 = vmatpush1.msra.mxu0 %v503
    %531 = vmatprep.subr.mxu0 0.0
    %532 = vmatpush1.msra.mxu0 %v504
    %533 = vmatprep.subr.mxu0 0.0
    %534 = vmatpush1.msra.mxu0 %v505
    %535 = vmatprep.subr.mxu0 0.0
    %536 = vmatpush1.msra.mxu0 %v506
    %537 = vmatprep.subr.mxu0 0.0
    %538 = vmatpush1.msra.mxu0 %v507
    %539 = vmatprep.subr.mxu0 0.0
    %540 = vmatpush1.msra.mxu0 %v508
    %541 = vmatprep.subr.mxu0 0.0
    %542 = vmatpush1.msra.mxu0 %v509
    %543 = vmatprep.subr.mxu0 0.0
    %544 = vmatpush1.msra.mxu0 %v510
    %545 = vmatprep.subr.mxu0 0.0
    %546 = vmatpush1.msra.mxu0 %v511
    %547 = vmatprep.subr.mxu0 0.0
    %548 = vmatpush1.msra.mxu0 %v512
    %549 = vmatprep.subr.mxu0 0.0
    %550 = vmatpush1.msra.mxu0 0.0
    %551 = vmatprep.subr.mxu0 0.0
    %552 = vmatpush1.msra.mxu0 0.0
    %553 = vmatprep.subr.mxu0 0.0
    %554 = vmatpush1.msra.mxu0 0.0
    %555 = vmatprep.subr.mxu0 0.0
    %556 = vmatpush1.msra.mxu0 0.0
    %557 = vmatprep.subr.mxu0 0.0
    %558 = vmatpush1.msra.mxu0 0.0
    %559 = vmatprep.subr.mxu0 0.0
    %560 = vmatpush1.msra.mxu0 0.0
    %561 = vmatprep.subr.mxu0 0.0
    %562 = vmatpush1.msra.mxu0 0.0
    %563 = vmatprep.subr.mxu0 0.0
    %564 = vmatpush1.msra.mxu0 0.0
    %565 = vmatprep.subr.mxu0 0.0
    %566 = vmatpush1.msra.mxu0 0.0
    %567 = vmatprep.subr.mxu0 0.0
    %568 = vmatpush1.msra.mxu0 0.0
    %569 = vmatprep.subr.mxu0 0.0
    %570 = vmatpush1.msra.mxu0 0.0
    %571 = vmatprep.subr.mxu0 0.0
    %572 = vmatpush1.msra.mxu0 0.0
    %573 = vmatprep.subr.mxu0 0.0
    %574 = vmatpush1.msra.mxu0 0.0
    %575 = vmatprep.subr.mxu0 0.0
    %576 = vmatpush1.msra.mxu0 0.0
    %577 = vmatprep.subr.mxu0 0.0
    %578 = vmatpush1.msra.mxu0 0.0
    %579 = vmatprep.subr.mxu0 0.0
    %580 = vmatpush1.msra.mxu0 0.0
    %581 = vmatprep.mubr.f32.mxu0 0.0
    %582 = vmatmul.mubr.f32.gmra.mrb[0].mxu0 %v493
    %v583 = vpop.f32.mrb[0].mxu0
    %v584 = vadd.f32 %v516, %v583
    %v585 = vpop.f32.mrb[0].mxu0
    %586 = vmatprep.mubr.f32.mxu0 0.0
    %587 = vmatmul.mubr.f32.gmra.mrb[0].mxu0 %v494
    %v588 = vpop.f32.mrb[0].mxu0
    %v589 = vadd.f32 %v516, %v588
    %v590 = vpop.f32.mrb[0].mxu0
    %591 = vmatprep.mubr.f32.mxu0 0.0
    %592 = vmatmul.mubr.f32.gmra.mrb[0].mxu0 %v495
    %v593 = vpop.f32.mrb[0].mxu0
    %v594 = vadd.f32 %v516, %v593
    %v595 = vpop.f32.mrb[0].mxu0
    %596 = vmatprep.mubr.f32.mxu0 0.0
    %597 = vmatmul.mubr.f32.gmra.mrb[0].mxu0 %v496
    %v598 = vpop.f32.mrb[0].mxu0
    %v599 = vadd.f32 %v516, %v598
    %v600 = vpop.f32.mrb[0].mxu0
    %601 = vdwg.mxu0
    %602 = vst [vmem:[%s11] sm:$0xff] %v584
    %603 = vst [vmem:[%s11 + $0x8] sm:$0xff] %v589
    %604 = vst [vmem:[%s11 + $0x10] sm:$0xff] %v594
    %605 = vst [vmem:[%s11 + $0x18] sm:$0xff] %v599
    %v606 = vld [vmem:[#allocation11] sm:$0xff]
    %v607 = vld [vmem:[#allocation11 + $0x8] sm:$0xff]
    %v608 = vld [vmem:[#allocation11 + $0x10] sm:$0xff]
    %v609 = vld [vmem:[#allocation11 + $0x18] sm:$0xff]
    %v610 = vld [vmem:[#allocation11 + $0x20] sm:$0xff]
    %v611 = vld [vmem:[#allocation11 + $0x28] sm:$0xff]
    %v612 = vld [vmem:[#allocation11 + $0x30] sm:$0xff]
    %v613 = vld [vmem:[#allocation11 + $0x38] sm:$0xff]
    %v614 = vld [vmem:[#allocation11 + $0x40] sm:$0xff]
    %v615 = vld [vmem:[#allocation11 + $0x48] sm:$0xff]
    %v616 = vld [vmem:[#allocation11 + $0x50] sm:$0xff]
    %v617 = vld [vmem:[#allocation11 + $0x58] sm:$0xff]
    %v618 = vld [vmem:[#allocation11 + $0x60] sm:$0xff]
    %v619 = vld [vmem:[#allocation11 + $0x68] sm:$0xff]
    %v620 = vld [vmem:[#allocation11 + $0x70] sm:$0xff]
    %v621 = vld [vmem:[#allocation11 + $0x78] sm:$0xff]
    %v622 = vlaneseq
    %v623 = vshrl.u32 %v622, 7
    %v624 = vsub.s32 4, %v623
    %v625 = vrot.slane %v160, %v624
    %626 = vmatprep.subr.mxu0 0.0
    %627 = vmatpush1.msra.mxu0 %v606
    %628 = vmatprep.subr.mxu0 0.0
    %629 = vmatpush1.msra.mxu0 %v607
    %630 = vmatprep.subr.mxu0 0.0
    %631 = vmatpush1.msra.mxu0 %v608
    %632 = vmatprep.subr.mxu0 0.0
    %633 = vmatpush1.msra.mxu0 %v609
    %634 = vmatprep.subr.mxu0 0.0
    %635 = vmatpush1.msra.mxu0 %v610
    %636 = vmatprep.subr.mxu0 0.0
    %637 = vmatpush1.msra.mxu0 %v611
    %638 = vmatprep.subr.mxu0 0.0
    %639 = vmatpush1.msra.mxu0 %v612
    %640 = vmatprep.subr.mxu0 0.0
    %641 = vmatpush1.msra.mxu0 %v613
    %642 = vmatprep.subr.mxu0 0.0
    %643 = vmatpush1.msra.mxu0 %v614
    %644 = vmatprep.subr.mxu0 0.0
    %645 = vmatpush1.msra.mxu0 %v615
    %646 = vmatprep.subr.mxu0 0.0
    %647 = vmatpush1.msra.mxu0 %v616
    %648 = vmatprep.subr.mxu0 0.0
    %649 = vmatpush1.msra.mxu0 %v617
    %650 = vmatprep.subr.mxu0 0.0
    %651 = vmatpush1.msra.mxu0 %v618
    %652 = vmatprep.subr.mxu0 0.0
    %653 = vmatpush1.msra.mxu0 %v619
    %654 = vmatprep.subr.mxu0 0.0
    %655 = vmatpush1.msra.mxu0 %v620
    %656 = vmatprep.subr.mxu0 0.0
    %657 = vmatpush1.msra.mxu0 %v621
    %658 = vmatprep.subr.mxu0 0.0
    %659 = vmatpush1.msra.mxu0 0.0
    %660 = vmatprep.subr.mxu0 0.0
    %661 = vmatpush1.msra.mxu0 0.0
    %662 = vmatprep.subr.mxu0 0.0
    %663 = vmatpush1.msra.mxu0 0.0
    %664 = vmatprep.subr.mxu0 0.0
    %665 = vmatpush1.msra.mxu0 0.0
    %666 = vmatprep.subr.mxu0 0.0
    %667 = vmatpush1.msra.mxu0 0.0
    %668 = vmatprep.subr.mxu0 0.0
    %669 = vmatpush1.msra.mxu0 0.0
    %670 = vmatprep.subr.mxu0 0.0
    %671 = vmatpush1.msra.mxu0 0.0
    %672 = vmatprep.subr.mxu0 0.0
    %673 = vmatpush1.msra.mxu0 0.0
    %674 = vmatprep.subr.mxu0 0.0
    %675 = vmatpush1.msra.mxu0 0.0
    %676 = vmatprep.subr.mxu0 0.0
    %677 = vmatpush1.msra.mxu0 0.0
    %678 = vmatprep.subr.mxu0 0.0
    %679 = vmatpush1.msra.mxu0 0.0
    %680 = vmatprep.subr.mxu0 0.0
    %681 = vmatpush1.msra.mxu0 0.0
    %682 = vmatprep.subr.mxu0 0.0
    %683 = vmatpush1.msra.mxu0 0.0
    %684 = vmatprep.subr.mxu0 0.0
    %685 = vmatpush1.msra.mxu0 0.0
    %686 = vmatprep.subr.mxu0 0.0
    %687 = vmatpush1.msra.mxu0 0.0
    %688 = vmatprep.subr.mxu0 0.0
    %689 = vmatpush1.msra.mxu0 0.0
    %690 = vmatprep.mubr.f32.mxu0 0.0
    %691 = vmatmul.mubr.f32.gmra.mrb[0].mxu0 %v584
    %v692 = vpop.f32.mrb[0].mxu0
    %v693 = vadd.f32 %v625, %v692
    %v694 = vpop.f32.mrb[0].mxu0
    %695 = vmatprep.mubr.f32.mxu0 0.0
    %696 = vmatmul.mubr.f32.gmra.mrb[0].mxu0 %v589
    %v697 = vpop.f32.mrb[0].mxu0
    %v698 = vadd.f32 %v625, %v697
    %v699 = vpop.f32.mrb[0].mxu0
    %700 = vmatprep.mubr.f32.mxu0 0.0
    %701 = vmatmul.mubr.f32.gmra.mrb[0].mxu0 %v594
    %v702 = vpop.f32.mrb[0].mxu0
    %v703 = vadd.f32 %v625, %v702
    %v704 = vpop.f32.mrb[0].mxu0
    %705 = vmatprep.mubr.f32.mxu0 0.0
    %706 = vmatmul.mubr.f32.gmra.mrb[0].mxu0 %v599
    %v707 = vpop.f32.mrb[0].mxu0
    %v708 = vadd.f32 %v625, %v707
    %v709 = vpop.f32.mrb[0].mxu0
    %710 = vdwg.mxu0
    %v711 = vmax.f32 %v693, 0.0
    %v712 = vmax.f32 %v698, 0.0
    %v713 = vmax.f32 %v703, 0.0
    %v714 = vmax.f32 %v708, 0.0
    %v715 = vld [vmem:[#allocation13] sm:$0xff]
    %v716 = vld [vmem:[#allocation13 + $0x8] sm:$0xff]
    %v717 = vld [vmem:[#allocation13 + $0x10] sm:$0xff]
    %v718 = vld [vmem:[#allocation13 + $0x18] sm:$0xff]
    %v719 = vld [vmem:[#allocation13 + $0x20] sm:$0xff]
    %v720 = vld [vmem:[#allocation13 + $0x28] sm:$0xff]
    %v721 = vld [vmem:[#allocation13 + $0x30] sm:$0xff]
    %v722 = vld [vmem:[#allocation13 + $0x38] sm:$0xff]
    %v723 = vld [vmem:[#allocation13 + $0x40] sm:$0xff]
    %v724 = vld [vmem:[#allocation13 + $0x48] sm:$0xff]
    %v725 = vld [vmem:[#allocation13 + $0x50] sm:$0xff]
    %v726 = vld [vmem:[#allocation13 + $0x58] sm:$0xff]
    %v727 = vld [vmem:[#allocation13 + $0x60] sm:$0xff]
    %v728 = vld [vmem:[#allocation13 + $0x68] sm:$0xff]
    %v729 = vld [vmem:[#allocation13 + $0x70] sm:$0xff]
    %v730 = vld [vmem:[#allocation13 + $0x78] sm:$0xff]
    %v731 = vlaneseq
    %v732 = vshrl.u32 %v731, 7
    %v733 = vsub.s32 5, %v732
    %v734 = vrot.slane %v160, %v733
    %735 = vmatprep.subr.mxu0 0.0
    %736 = vmatpush1.msra.mxu0 %v715
    %737 = vmatprep.subr.mxu0 0.0
    %738 = vmatpush1.msra.mxu0 %v716
    %739 = vmatprep.subr.mxu0 0.0
    %740 = vmatpush1.msra.mxu0 %v717
    %741 = vmatprep.subr.mxu0 0.0
    %742 = vmatpush1.msra.mxu0 %v718
    %743 = vmatprep.subr.mxu0 0.0
    %744 = vmatpush1.msra.mxu0 %v719
    %745 = vmatprep.subr.mxu0 0.0
    %746 = vmatpush1.msra.mxu0 %v720
    %747 = vmatprep.subr.mxu0 0.0
    %748 = vmatpush1.msra.mxu0 %v721
    %749 = vmatprep.subr.mxu0 0.0
    %750 = vmatpush1.msra.mxu0 %v722
    %751 = vmatprep.subr.mxu0 0.0
    %752 = vmatpush1.msra.mxu0 %v723
    %753 = vmatprep.subr.mxu0 0.0
    %754 = vmatpush1.msra.mxu0 %v724
    %755 = vmatprep.subr.mxu0 0.0
    %756 = vmatpush1.msra.mxu0 %v725
    %757 = vmatprep.subr.mxu0 0.0
    %758 = vmatpush1.msra.mxu0 %v726
    %759 = vmatprep.subr.mxu0 0.0
    %760 = vmatpush1.msra.mxu0 %v727
    %761 = vmatprep.subr.mxu0 0.0
    %762 = vmatpush1.msra.mxu0 %v728
    %763 = vmatprep.subr.mxu0 0.0
    %764 = vmatpush1.msra.mxu0 %v729
    %765 = vmatprep.subr.mxu0 0.0
    %766 = vmatpush1.msra.mxu0 %v730
    %767 = vmatprep.subr.mxu0 0.0
    %768 = vmatpush1.msra.mxu0 0.0
    %769 = vmatprep.subr.mxu0 0.0
    %770 = vmatpush1.msra.mxu0 0.0
    %771 = vmatprep.subr.mxu0 0.0
    %772 = vmatpush1.msra.mxu0 0.0
    %773 = vmatprep.subr.mxu0 0.0
    %774 = vmatpush1.msra.mxu0 0.0
    %775 = vmatprep.subr.mxu0 0.0
    %776 = vmatpush1.msra.mxu0 0.0
    %777 = vmatprep.subr.mxu0 0.0
    %778 = vmatpush1.msra.mxu0 0.0
    %779 = vmatprep.subr.mxu0 0.0
    %780 = vmatpush1.msra.mxu0 0.0
    %781 = vmatprep.subr.mxu0 0.0
    %782 = vmatpush1.msra.mxu0 0.0
    %783 = vmatprep.subr.mxu0 0.0
    %784 = vmatpush1.msra.mxu0 0.0
    %785 = vmatprep.subr.mxu0 0.0
    %786 = vmatpush1.msra.mxu0 0.0
    %787 = vmatprep.subr.mxu0 0.0
    %788 = vmatpush1.msra.mxu0 0.0
    %789 = vmatprep.subr.mxu0 0.0
    %790 = vmatpush1.msra.mxu0 0.0
    %791 = vmatprep.subr.mxu0 0.0
    %792 = vmatpush1.msra.mxu0 0.0
    %793 = vmatprep.subr.mxu0 0.0
    %794 = vmatpush1.msra.mxu0 0.0
    %795 = vmatprep.subr.mxu0 0.0
    %796 = vmatpush1.msra.mxu0 0.0
    %797 = vmatprep.subr.mxu0 0.0
    %798 = vmatpush1.msra.mxu0 0.0
    %799 = vmatprep.mubr.f32.mxu0 0.0
    %800 = vmatmul.mubr.f32.gmra.mrb[0].mxu0 %v711
    %v801 = vpop.f32.mrb[0].mxu0
    %v802 = vadd.f32 %v734, %v801
    %v803 = vpop.f32.mrb[0].mxu0
    %804 = vmatprep.mubr.f32.mxu0 0.0
    %805 = vmatmul.mubr.f32.gmra.mrb[0].mxu0 %v712
    %v806 = vpop.f32.mrb[0].mxu0
    %v807 = vadd.f32 %v734, %v806
    %v808 = vpop.f32.mrb[0].mxu0
    %809 = vmatprep.mubr.f32.mxu0 0.0
    %810 = vmatmul.mubr.f32.gmra.mrb[0].mxu0 %v713
    %v811 = vpop.f32.mrb[0].mxu0
    %v812 = vadd.f32 %v734, %v811
    %v813 = vpop.f32.mrb[0].mxu0
    %814 = vmatprep.mubr.f32.mxu0 0.0
    %815 = vmatmul.mubr.f32.gmra.mrb[0].mxu0 %v714
    %v816 = vpop.f32.mrb[0].mxu0
    %v817 = vadd.f32 %v734, %v816
    %v818 = vpop.f32.mrb[0].mxu0
    %819 = vdwg.mxu0
    %v820 = vmax.f32 %v802, 0.0
    %v821 = vmax.f32 %v807, 0.0
    %v822 = vmax.f32 %v812, 0.0
    %v823 = vmax.f32 %v817, 0.0
    %v824 = vld [vmem:[#allocation14] sm:$0xff]
    %v825 = vld [vmem:[#allocation14 + $0x8] sm:$0xff]
    %v826 = vld [vmem:[#allocation14 + $0x10] sm:$0xff]
    %v827 = vld [vmem:[#allocation14 + $0x18] sm:$0xff]
    %v828 = vld [vmem:[#allocation14 + $0x20] sm:$0xff]
    %v829 = vld [vmem:[#allocation14 + $0x28] sm:$0xff]
    %v830 = vld [vmem:[#allocation14 + $0x30] sm:$0xff]
    %v831 = vld [vmem:[#allocation14 + $0x38] sm:$0xff]
    %v832 = vld [vmem:[#allocation14 + $0x40] sm:$0xff]
    %v833 = vld [vmem:[#allocation14 + $0x48] sm:$0xff]
    %v834 = vld [vmem:[#allocation14 + $0x50] sm:$0xff]
    %v835 = vld [vmem:[#allocation14 + $0x58] sm:$0xff]
    %v836 = vld [vmem:[#allocation14 + $0x60] sm:$0xff]
    %v837 = vld [vmem:[#allocation14 + $0x68] sm:$0xff]
    %v838 = vld [vmem:[#allocation14 + $0x70] sm:$0xff]
    %v839 = vld [vmem:[#allocation14 + $0x78] sm:$0xff]
    %v840 = vlaneseq
    %v841 = vshrl.u32 %v840, 7
    %v842 = vsub.s32 6, %v841
    %v843 = vrot.slane %v160, %v842
    %844 = vmatprep.subr.mxu0 0.0
    %845 = vmatpush1.msra.mxu0 %v824
    %846 = vmatprep.subr.mxu0 0.0
    %847 = vmatpush1.msra.mxu0 %v825
    %848 = vmatprep.subr.mxu0 0.0
    %849 = vmatpush1.msra.mxu0 %v826
    %850 = vmatprep.subr.mxu0 0.0
    %851 = vmatpush1.msra.mxu0 %v827
    %852 = vmatprep.subr.mxu0 0.0
    %853 = vmatpush1.msra.mxu0 %v828
    %854 = vmatprep.subr.mxu0 0.0
    %855 = vmatpush1.msra.mxu0 %v829
    %856 = vmatprep.subr.mxu0 0.0
    %857 = vmatpush1.msra.mxu0 %v830
    %858 = vmatprep.subr.mxu0 0.0
    %859 = vmatpush1.msra.mxu0 %v831
    %860 = vmatprep.subr.mxu0 0.0
    %861 = vmatpush1.msra.mxu0 %v832
    %862 = vmatprep.subr.mxu0 0.0
    %863 = vmatpush1.msra.mxu0 %v833
    %864 = vmatprep.subr.mxu0 0.0
    %865 = vmatpush1.msra.mxu0 %v834
    %866 = vmatprep.subr.mxu0 0.0
    %867 = vmatpush1.msra.mxu0 %v835
    %868 = vmatprep.subr.mxu0 0.0
    %869 = vmatpush1.msra.mxu0 %v836
    %870 = vmatprep.subr.mxu0 0.0
    %871 = vmatpush1.msra.mxu0 %v837
    %872 = vmatprep.subr.mxu0 0.0
    %873 = vmatpush1.msra.mxu0 %v838
    %874 = vmatprep.subr.mxu0 0.0
    %875 = vmatpush1.msra.mxu0 %v839
    %876 = vmatprep.subr.mxu0 0.0
    %877 = vmatpush1.msra.mxu0 0.0
    %878 = vmatprep.subr.mxu0 0.0
    %879 = vmatpush1.msra.mxu0 0.0
    %880 = vmatprep.subr.mxu0 0.0
    %881 = vmatpush1.msra.mxu0 0.0
    %882 = vmatprep.subr.mxu0 0.0
    %883 = vmatpush1.msra.mxu0 0.0
    %884 = vmatprep.subr.mxu0 0.0
    %885 = vmatpush1.msra.mxu0 0.0
    %886 = vmatprep.subr.mxu0 0.0
    %887 = vmatpush1.msra.mxu0 0.0
    %888 = vmatprep.subr.mxu0 0.0
    %889 = vmatpush1.msra.mxu0 0.0
    %890 = vmatprep.subr.mxu0 0.0
    %891 = vmatpush1.msra.mxu0 0.0
    %892 = vmatprep.subr.mxu0 0.0
    %893 = vmatpush1.msra.mxu0 0.0
    %894 = vmatprep.subr.mxu0 0.0
    %895 = vmatpush1.msra.mxu0 0.0
    %896 = vmatprep.subr.mxu0 0.0
    %897 = vmatpush1.msra.mxu0 0.0
    %898 = vmatprep.subr.mxu0 0.0
    %899 = vmatpush1.msra.mxu0 0.0
    %900 = vmatprep.subr.mxu0 0.0
    %901 = vmatpush1.msra.mxu0 0.0
    %902 = vmatprep.subr.mxu0 0.0
    %903 = vmatpush1.msra.mxu0 0.0
    %904 = vmatprep.subr.mxu0 0.0
    %905 = vmatpush1.msra.mxu0 0.0
    %906 = vmatprep.subr.mxu0 0.0
    %907 = vmatpush1.msra.mxu0 0.0
    %908 = vmatprep.mubr.f32.mxu0 0.0
    %909 = vmatmul.mubr.f32.gmra.mrb[0].mxu0 %v820
    %v910 = vpop.f32.mrb[0].mxu0
    %v911 = vadd.f32 %v843, %v910
    %v912 = vpop.f32.mrb[0].mxu0
    %913 = vmatprep.mubr.f32.mxu0 0.0
    %914 = vmatmul.mubr.f32.gmra.mrb[0].mxu0 %v821
    %v915 = vpop.f32.mrb[0].mxu0
    %v916 = vadd.f32 %v843, %v915
    %v917 = vpop.f32.mrb[0].mxu0
    %918 = vmatprep.mubr.f32.mxu0 0.0
    %919 = vmatmul.mubr.f32.gmra.mrb[0].mxu0 %v822
    %v920 = vpop.f32.mrb[0].mxu0
    %v921 = vadd.f32 %v843, %v920
    %v922 = vpop.f32.mrb[0].mxu0
    %923 = vmatprep.mubr.f32.mxu0 0.0
    %924 = vmatmul.mubr.f32.gmra.mrb[0].mxu0 %v823
    %v925 = vpop.f32.mrb[0].mxu0
    %v926 = vadd.f32 %v843, %v925
    %v927 = vpop.f32.mrb[0].mxu0
    %928 = vdwg.mxu0
    %v929 = vmax.f32 %v911, 0.0
    %v930 = vmax.f32 %v916, 0.0
    %v931 = vmax.f32 %v921, 0.0
    %v932 = vmax.f32 %v926, 0.0
    %v933 = vld [vmem:[#allocation16] sm:$0xff]
    %v934 = vld [vmem:[#allocation16 + $0x8] sm:$0xff]
    %v935 = vld [vmem:[#allocation16 + $0x10] sm:$0xff]
    %v936 = vld [vmem:[#allocation16 + $0x18] sm:$0xff]
    %v937 = vld [vmem:[#allocation16 + $0x20] sm:$0xff]
    %v938 = vld [vmem:[#allocation16 + $0x28] sm:$0xff]
    %v939 = vld [vmem:[#allocation16 + $0x30] sm:$0xff]
    %v940 = vld [vmem:[#allocation16 + $0x38] sm:$0xff]
    %v941 = vld [vmem:[#allocation16 + $0x40] sm:$0xff]
    %v942 = vld [vmem:[#allocation16 + $0x48] sm:$0xff]
    %v943 = vld [vmem:[#allocation16 + $0x50] sm:$0xff]
    %v944 = vld [vmem:[#allocation16 + $0x58] sm:$0xff]
    %v945 = vld [vmem:[#allocation16 + $0x60] sm:$0xff]
    %v946 = vld [vmem:[#allocation16 + $0x68] sm:$0xff]
    %v947 = vld [vmem:[#allocation16 + $0x70] sm:$0xff]
    %v948 = vld [vmem:[#allocation16 + $0x78] sm:$0xff]
    %v949 = vlaneseq
    %v950 = vshrl.u32 %v949, 7
    %v951 = vsub.s32 7, %v950
    %v952 = vrot.slane %v160, %v951
    %953 = vmatprep.subr.mxu0 0.0
    %954 = vmatpush1.msra.mxu0 %v933
    %955 = vmatprep.subr.mxu0 0.0
    %956 = vmatpush1.msra.mxu0 %v934
    %957 = vmatprep.subr.mxu0 0.0
    %958 = vmatpush1.msra.mxu0 %v935
    %959 = vmatprep.subr.mxu0 0.0
    %960 = vmatpush1.msra.mxu0 %v936
    %961 = vmatprep.subr.mxu0 0.0
    %962 = vmatpush1.msra.mxu0 %v937
    %963 = vmatprep.subr.mxu0 0.0
    %964 = vmatpush1.msra.mxu0 %v938
    %965 = vmatprep.subr.mxu0 0.0
    %966 = vmatpush1.msra.mxu0 %v939
    %967 = vmatprep.subr.mxu0 0.0
    %968 = vmatpush1.msra.mxu0 %v940
    %969 = vmatprep.subr.mxu0 0.0
    %970 = vmatpush1.msra.mxu0 %v941
    %971 = vmatprep.subr.mxu0 0.0
    %972 = vmatpush1.msra.mxu0 %v942
    %973 = vmatprep.subr.mxu0 0.0
    %974 = vmatpush1.msra.mxu0 %v943
    %975 = vmatprep.subr.mxu0 0.0
    %976 = vmatpush1.msra.mxu0 %v944
    %977 = vmatprep.subr.mxu0 0.0
    %978 = vmatpush1.msra.mxu0 %v945
    %979 = vmatprep.subr.mxu0 0.0
    %980 = vmatpush1.msra.mxu0 %v946
    %981 = vmatprep.subr.mxu0 0.0
    %982 = vmatpush1.msra.mxu0 %v947
    %983 = vmatprep.subr.mxu0 0.0
    %984 = vmatpush1.msra.mxu0 %v948
    %985 = vmatprep.subr.mxu0 0.0
    %986 = vmatpush1.msra.mxu0 0.0
    %987 = vmatprep.subr.mxu0 0.0
    %988 = vmatpush1.msra.mxu0 0.0
    %989 = vmatprep.subr.mxu0 0.0
    %990 = vmatpush1.msra.mxu0 0.0
    %991 = vmatprep.subr.mxu0 0.0
    %992 = vmatpush1.msra.mxu0 0.0
    %993 = vmatprep.subr.mxu0 0.0
    %994 = vmatpush1.msra.mxu0 0.0
    %995 = vmatprep.subr.mxu0 0.0
    %996 = vmatpush1.msra.mxu0 0.0
    %997 = vmatprep.subr.mxu0 0.0
    %998 = vmatpush1.msra.mxu0 0.0
    %999 = vmatprep.subr.mxu0 0.0
    %1000 = vmatpush1.msra.mxu0 0.0
    %1001 = vmatprep.subr.mxu0 0.0
    %1002 = vmatpush1.msra.mxu0 0.0
    %1003 = vmatprep.subr.mxu0 0.0
    %1004 = vmatpush1.msra.mxu0 0.0
    %1005 = vmatprep.subr.mxu0 0.0
    %1006 = vmatpush1.msra.mxu0 0.0
    %1007 = vmatprep.subr.mxu0 0.0
    %1008 = vmatpush1.msra.mxu0 0.0
    %1009 = vmatprep.subr.mxu0 0.0
    %1010 = vmatpush1.msra.mxu0 0.0
    %1011 = vmatprep.subr.mxu0 0.0
    %1012 = vmatpush1.msra.mxu0 0.0
    %1013 = vmatprep.subr.mxu0 0.0
    %1014 = vmatpush1.msra.mxu0 0.0
    %1015 = vmatprep.subr.mxu0 0.0
    %1016 = vmatpush1.msra.mxu0 0.0
    %1017 = vmatprep.mubr.f32.mxu0 0.0
    %1018 = vmatmul.mubr.f32.gmra.mrb[0].mxu0 %v929
    %v1019 = vpop.f32.mrb[0].mxu0
    %v1020 = vadd.f32 %v952, %v1019
    %v1021 = vpop.f32.mrb[0].mxu0
    %1022 = vmatprep.mubr.f32.mxu0 0.0
    %1023 = vmatmul.mubr.f32.gmra.mrb[0].mxu0 %v930
    %v1024 = vpop.f32.mrb[0].mxu0
    %v1025 = vadd.f32 %v952, %v1024
    %v1026 = vpop.f32.mrb[0].mxu0
    %1027 = vmatprep.mubr.f32.mxu0 0.0
    %1028 = vmatmul.mubr.f32.gmra.mrb[0].mxu0 %v931
    %v1029 = vpop.f32.mrb[0].mxu0
    %v1030 = vadd.f32 %v952, %v1029
    %v1031 = vpop.f32.mrb[0].mxu0
    %1032 = vmatprep.mubr.f32.mxu0 0.0
    %1033 = vmatmul.mubr.f32.gmra.mrb[0].mxu0 %v932
    %v1034 = vpop.f32.mrb[0].mxu0
    %v1035 = vadd.f32 %v952, %v1034
    %v1036 = vpop.f32.mrb[0].mxu0
    %1037 = vdwg.mxu0
    %1038 = vst [vmem:[#allocation17] sm:$0xff] %v1020
    %1039 = vst [vmem:[#allocation17 + $0x8] sm:$0xff] %v1025
    %1040 = vst [vmem:[#allocation17 + $0x10] sm:$0xff] %v1030
    %1041 = vst [vmem:[#allocation17 + $0x18] sm:$0xff] %v1035
    // Predicated region
    $region78: #{edesc_ae_forward.1} parent=1 // pred_check
      _
    $region79: #{edesc_ae_forward.1} parent=1 // pred_check_branch
      %1043 = sbr.rel (0) target = $region81
    $region80: #{edesc_ae_forward.1} parent=1 // pred_region
      %s1045 = ssub.s32 512, 512
      %1046 = vsyncadd [#allocation4], %s1045
      %s1047 = sshll.u32 [#allocation17], 4
      %s1048 = int_to_ptr.vmem [resolvable:$true] %s1047
      %1053 = dma.vmem_to_hbm [thread:$0]  %s1048, 512, %s10, [#allocation4], 128, 128, 8
    $region81: #{edesc_ae_forward.1} parent=1 // pred_fallthru
      _
    // Predicated region
    $region82: #{edesc_ae_forward.1} parent=1 // pred_check
      _
    $region83: #{edesc_ae_forward.1} parent=1 // pred_check_branch
      %1055 = sbr.rel (0) target = $region85
    $region84: #{edesc_ae_forward.1} parent=1 // pred_region
      _
    $region85: #{edesc_ae_forward.1} parent=1 // pred_fallthru
      _
    // Predicated region
    $region86: #{edesc_ae_forward.1} parent=1 // pred_check
      _
    $region87: #{edesc_ae_forward.1} parent=1 // pred_check_branch
      %1057 = sbr.rel (0) target = $region89
    $region88: #{edesc_ae_forward.1} parent=1 // pred_region
      %1058 = dma.done [#allocation4], 512
    $region89: #{edesc_ae_forward.1} parent=1 // pred_fallthru
      _
    // Predicated region
    $region90: #{edesc_ae_forward.1} parent=1 // pred_check
      _
    $region91: #{edesc_ae_forward.1} parent=1 // pred_check_branch
      %1060 = sbr.rel (0) target = $region93
    $region92: #{edesc_ae_forward.1} parent=1 // pred_region
      _
    $region93: #{edesc_ae_forward.1} parent=1 // pred_fallthru
      _
    %1061 = vsyncpa [#allocation3], 1
    %1062 = vsyncpa [#allocation6], 1
    %1063 = vsyncpa [#allocation9], 1
    %1064 = vsyncpa [#allocation12], 1
    %1065 = vsyncpa [#allocation15], 1
    %1066 = vsyncpa [#allocation4], 1

// kernel: edesc_ae_forward.1
$region0: #{edesc_ae_forward.1}
  #allocation0 [shape = 'u32[]', space=smem, size = 0x4, offset = 0x4, fixed_abs, tag = 'smem constant byte address 0x4 - core index']
  #allocation1 [shape = 'u32[144,128]{1,0:T(1,128)}', space=vmem, size = 0x12000, scoped, tag = 'internal scratch']
  %s0 = inlined_call_operand.hbm [shape: f32[32,64], index: 0, kind: input, shape index: {}]
  %s1 = inlined_call_operand.hbm [shape: f32[64,128], index: 1, kind: input, shape index: {}]
  %s2 = inlined_call_operand.hbm [shape: f32[128,128], index: 2, kind: input, shape index: {}]
  %s3 = inlined_call_operand.hbm [shape: f32[128,128], index: 3, kind: input, shape index: {}]
  %s4 = inlined_call_operand.hbm [shape: f32[128,128], index: 4, kind: input, shape index: {}]
  %s5 = inlined_call_operand.hbm [shape: f32[128,128], index: 5, kind: input, shape index: {}]
  %s6 = inlined_call_operand.hbm [shape: f32[128,128], index: 6, kind: input, shape index: {}]
  %s7 = inlined_call_operand.hbm [shape: f32[128,128], index: 7, kind: input, shape index: {}]
  %s8 = inlined_call_operand.hbm [shape: f32[128,128], index: 8, kind: input, shape index: {}]
  %s9 = inlined_call_operand.vmem [shape: f32[8,128], index: 9, kind: input, shape index: {}]
  %s10 = inlined_call_operand.hbm [shape: f32[32,128], index: 10, kind: output, shape index: {0}]
  %s11 = inlined_call_operand.vmem [shape: f32[32,128], index: 11, kind: output, shape index: {1}]
  %12 = xla_tuple %s10, %s11
  %s13 = sld [smem:[#allocation0]]
  $region94: #{edesc_ae_forward.1} parent=0
    _
  %s15 = ssub.s32 1, %s13
  %s16 = scalar_select 0, %s15, %s13
  $region1: #{edesc_ae_forward.1} parent=0
    #allocation2 [shape = 'u8[16384]{0}', space=vmem, size = 0x4000, scoped, tag = 'input window, operand 0, single buffered']
    #allocation3 [shape = 's32[1]{0}', space=sflag, size = 0x4, scoped, tag = 'scoped memory for edesc_ae_forward.1']
    #allocation4 [shape = 's32[1]{0}', space=sflag, size = 0x4, scoped, tag = 'scoped memory for edesc_ae_forward.1']
    #allocation5 [shape = 'u8[32768]{0}', space=vmem, size = 0x8000, scoped, tag = 'input window, operand 1, single buffered']
    #allocation6 [shape = 's32[1]{0}', space=sflag, size = 0x4, scoped, tag = 'scoped memory for edesc_ae_forward.1']
    #allocation7 [shape = 'u8[65536]{0}', space=vmem, size = 0x10000, scoped, tag = 'input window, operand 2, single buffered']
    #allocation8 [shape = 'u8[65536]{0}', space=vmem, size = 0x10000, scoped, tag = 'input window, operand 3, single buffered']
    #allocation9 [shape = 's32[1]{0}', space=sflag, size = 0x4, scoped, tag = 'scoped memory for edesc_ae_forward.1']
    #allocation10 [shape = 'u8[65536]{0}', space=vmem, size = 0x10000, scoped, tag = 'input window, operand 4, single buffered']
    #allocation11 [shape = 'u8[65536]{0}', space=vmem, size = 0x10000, scoped, tag = 'input window, operand 5, single buffered']
    #allocation12 [shape = 's32[1]{0}', space=sflag, size = 0x4, scoped, tag = 'scoped memory for edesc_ae_forward.1']
    #allocation13 [shape = 'u8[65536]{0}', space=vmem, size = 0x10000, scoped, tag = 'input window, operand 6, single buffered']
    #allocation14 [shape = 'u8[65536]{0}', space=vmem, size = 0x10000, scoped, tag = 'input window, operand 7, single buffered']
    #allocation15 [shape = 's32[1]{0}', space=sflag, size = 0x4, scoped, tag = 'scoped memory for edesc_ae_forward.1']
    #allocation16 [shape = 'u8[65536]{0}', space=vmem, size = 0x10000, scoped, tag = 'input window, operand 8, single buffered']
    #allocation17 [shape = 'u8[16384]{0}', space=vmem, size = 0x4000, scoped, tag = 'output window, operand 0, single buffered']
    %17 = vsyncpa [#allocation3], 0
    %18 = vsyncpa [#allocation6], 0
    %19 = vsyncpa [#allocation9], 0
    %20 = vsyncpa [#allocation12], 0
    %21 = vsyncpa [#allocation15], 0
    %22 = vsyncpa [#allocation4], 0
    // Predicated region
    $region2: #{edesc_ae_forward.1} parent=1 // pred_check
      _
    $region3: #{edesc_ae_forward.1} parent=1 // pred_check_branch
      %24 = sbr.rel (0) target = $region5
    $region4: #{edesc_ae_forward.1} parent=1 // pred_region
      %s26 = ssub.s32 512, 512
      %27 = vsyncadd [#allocation3], %s26
      %s28 = sshll.u32 [#allocation2], 4
      %s29 = int_to_ptr.vmem [resolvable:$true] %s28
      %34 = dma.hbm_to_vmem [thread:$0]  %s0, 512, %s29, [#allocation3], 128, 128, 8
    $region5: #{edesc_ae_forward.1} parent=1 // pred_fallthru
      _
    // Predicated region
    $region6: #{edesc_ae_forward.1} parent=1 // pred_check
      _
    $region7: #{edesc_ae_forward.1} parent=1 // pred_check_branch
      %36 = sbr.rel (0) target = $region9
    $region8: #{edesc_ae_forward.1} parent=1 // pred_region
      %s38 = ssub.s32 1024, 1024
      %39 = vsyncadd [#allocation6], %s38
      %s40 = sshll.u32 [#allocation5], 4
      %s41 = int_to_ptr.vmem [resolvable:$true] %s40
      %46 = dma.hbm_to_vmem [thread:$0]  %s1, 1024, %s41, [#allocation6], 128, 128, 8
    $region9: #{edesc_ae_forward.1} parent=1 // pred_fallthru
      _
    // Predicated region
    $region10: #{edesc_ae_forward.1} parent=1 // pred_check
      _
    $region11: #{edesc_ae_forward.1} parent=1 // pred_check_branch
      %48 = sbr.rel (0) target = $region13
    $region12: #{edesc_ae_forward.1} parent=1 // pred_region
      %s50 = ssub.s32 2048, 2048
      %51 = vsyncadd [#allocation6], %s50
      %s52 = sshll.u32 [#allocation7], 4
      %s53 = int_to_ptr.vmem [resolvable:$true] %s52
      %58 = dma.hbm_to_vmem [thread:$0]  %s2, 2048, %s53, [#allocation6], 128, 128, 8
    $region13: #{edesc_ae_forward.1} parent=1 // pred_fallthru
      _
    // Predicated region
    $region14: #{edesc_ae_forward.1} parent=1 // pred_check
      _
    $region15: #{edesc_ae_forward.1} parent=1 // pred_check_branch
      %60 = sbr.rel (0) target = $region17
    $region16: #{edesc_ae_forward.1} parent=1 // pred_region
      %s62 = ssub.s32 2048, 2048
      %63 = vsyncadd [#allocation9], %s62
      %s64 = sshll.u32 [#allocation8], 4
      %s65 = int_to_ptr.vmem [resolvable:$true] %s64
      %70 = dma.hbm_to_vmem [thread:$0]  %s3, 2048, %s65, [#allocation9], 128, 128, 8
    $region17: #{edesc_ae_forward.1} parent=1 // pred_fallthru
      _
    // Predicated region
    $region18: #{edesc_ae_forward.1} parent=1 // pred_check
      _
    $region19: #{edesc_ae_forward.1} parent=1 // pred_check_branch
      %72 = sbr.rel (0) target = $region21
    $region20: #{edesc_ae_forward.1} parent=1 // pred_region
      %s74 = ssub.s32 2048, 2048
      %75 = vsyncadd [#allocation9], %s74
      %s76 = sshll.u32 [#allocation10], 4
      %s77 = int_to_ptr.vmem [resolvable:$true] %s76
      %82 = dma.hbm_to_vmem [thread:$0]  %s4, 2048, %s77, [#allocation9], 128, 128, 8
    $region21: #{edesc_ae_forward.1} parent=1 // pred_fallthru
      _
    // Predicated region
    $region22: #{edesc_ae_forward.1} parent=1 // pred_check
      _
    $region23: #{edesc_ae_forward.1} parent=1 // pred_check_branch
      %84 = sbr.rel (0) target = $region25
    $region24: #{edesc_ae_forward.1} parent=1 // pred_region
      %s86 = ssub.s32 2048, 2048
      %87 = vsyncadd [#allocation12], %s86
      %s88 = sshll.u32 [#allocation11], 4
      %s89 = int_to_ptr.vmem [resolvable:$true] %s88
      %94 = dma.hbm_to_vmem [thread:$0]  %s5, 2048, %s89, [#allocation12], 128, 128, 8
    $region25: #{edesc_ae_forward.1} parent=1 // pred_fallthru
      _
    // Predicated region
    $region26: #{edesc_ae_forward.1} parent=1 // pred_check
      _
    $region27: #{edesc_ae_forward.1} parent=1 // pred_check_branch
      %96 = sbr.rel (0) target = $region29
    $region28: #{edesc_ae_forward.1} parent=1 // pred_region
      %s98 = ssub.s32 2048, 2048
      %99 = vsyncadd [#allocation12], %s98
      %s100 = sshll.u32 [#allocation13], 4
      %s101 = int_to_ptr.vmem [resolvable:$true] %s100
      %106 = dma.hbm_to_vmem [thread:$0]  %s6, 2048, %s101, [#allocation12], 128, 128, 8
    $region29: #{edesc_ae_forward.1} parent=1 // pred_fallthru
      _
    // Predicated region
    $region30: #{edesc_ae_forward.1} parent=1 // pred_check
      _
    $region31: #{edesc_ae_forward.1} parent=1 // pred_check_branch
      %108 = sbr.rel (0) target = $region33
    $region32: #{edesc_ae_forward.1} parent=1 // pred_region
      %s110 = ssub.s32 2048, 2048
      %111 = vsyncadd [#allocation15], %s110
      %s112 = sshll.u32 [#allocation14], 4
      %s113 = int_to_ptr.vmem [resolvable:$true] %s112
      %118 = dma.hbm_to_vmem [thread:$0]  %s7, 2048, %s113, [#allocation15], 128, 128, 8
    $region33: #{edesc_ae_forward.1} parent=1 // pred_fallthru
      _
    // Predicated region
    $region34: #{edesc_ae_forward.1} parent=1 // pred_check
      _
    $region35: #{edesc_ae_forward.1} parent=1 // pred_check_branch
      %120 = sbr.rel (0) target = $region37
    $region36: #{edesc_ae_forward.1} parent=1 // pred_region
      %s122 = ssub.s32 2048, 2048
      %123 = vsyncadd [#allocation15], %s122
      %s124 = sshll.u32 [#allocation16], 4
      %s125 = int_to_ptr.vmem [resolvable:$true] %s124
      %130 = dma.hbm_to_vmem [thread:$0]  %s8, 2048, %s125, [#allocation15], 128, 128, 8
    $region37: #{edesc_ae_forward.1} parent=1 // pred_fallthru
      _
    // Predicated region
    $region38: #{edesc_ae_forward.1} parent=1 // pred_check
      _
    $region39: #{edesc_ae_forward.1} parent=1 // pred_check_branch
      %132 = sbr.rel (0) target = $region41
    $region40: #{edesc_ae_forward.1} parent=1 // pred_region
      _
    $region41: #{edesc_ae_forward.1} parent=1 // pred_fallthru
      _
    // Predicated region
    $region42: #{edesc_ae_forward.1} parent=1 // pred_check
      _
    $region43: #{edesc_ae_forward.1} parent=1 // pred_check_branch
      %134 = sbr.rel (0) target = $region45
    $region44: #{edesc_ae_forward.1} parent=1 // pred_region
      %135 = dma.done [#allocation3], 512
    $region45: #{edesc_ae_forward.1} parent=1 // pred_fallthru
      _
    // Predicated region
    $region46: #{edesc_ae_forward.1} parent=1 // pred_check
      _
    $region47: #{edesc_ae_forward.1} parent=1 // pred_check_branch
      %137 = sbr.rel (0) target = $region49
    $region48: #{edesc_ae_forward.1} parent=1 // pred_region
      %138 = dma.done [#allocation6], 1024
    $region49: #{edesc_ae_forward.1} parent=1 // pred_fallthru
      _
    // Predicated region
    $region50: #{edesc_ae_forward.1} parent=1 // pred_check
      _
    $region51: #{edesc_ae_forward.1} parent=1 // pred_check_branch
      %140 = sbr.rel (0) target = $region53
    $region52: #{edesc_ae_forward.1} parent=1 // pred_region
      %141 = dma.done [#allocation6], 2048
    $region53: #{edesc_ae_forward.1} parent=1 // pred_fallthru
      _
    // Predicated region
    $region54: #{edesc_ae_forward.1} parent=1 // pred_check
      _
    $region55: #{edesc_ae_forward.1} parent=1 // pred_check_branch
      %143 = sbr.rel (0) target = $region57
    $region56: #{edesc_ae_forward.1} parent=1 // pred_region
      %144 = dma.done [#allocation9], 2048
    $region57: #{edesc_ae_forward.1} parent=1 // pred_fallthru
      _
    // Predicated region
    $region58: #{edesc_ae_forward.1} parent=1 // pred_check
      _
    $region59: #{edesc_ae_forward.1} parent=1 // pred_check_branch
      %146 = sbr.rel (0) target = $region61
    $region60: #{edesc_ae_forward.1} parent=1 // pred_region
      %147 = dma.done [#allocation9], 2048
    $region61: #{edesc_ae_forward.1} parent=1 // pred_fallthru
      _
    // Predicated region
    $region62: #{edesc_ae_forward.1} parent=1 // pred_check
      _
    $region63: #{edesc_ae_forward.1} parent=1 // pred_check_branch
      %149 = sbr.rel (0) target = $region65
    $region64: #{edesc_ae_forward.1} parent=1 // pred_region
      %150 = dma.done [#allocation12], 2048
    $region65: #{edesc_ae_forward.1} parent=1 // pred_fallthru
      _
    // Predicated region
    $region66: #{edesc_ae_forward.1} parent=1 // pred_check
      _
    $region67: #{edesc_ae_forward.1} parent=1 // pred_check_branch
      %152 = sbr.rel (0) target = $region69
    $region68: #{edesc_ae_forward.1} parent=1 // pred_region
      %153 = dma.done [#allocation12], 2048
    $region69: #{edesc_ae_forward.1} parent=1 // pred_fallthru
      _
    // Predicated region
    $region70: #{edesc_ae_forward.1} parent=1 // pred_check
      _
    $region71: #{edesc_ae_forward.1} parent=1 // pred_check_branch
      %155 = sbr.rel (0) target = $region73
    $region72: #{edesc_ae_forward.1} parent=1 // pred_region
      %156 = dma.done [#allocation15], 2048
    $region73: #{edesc_ae_forward.1} parent=1 // pred_fallthru
      _
    // Predicated region
    $region74: #{edesc_ae_forward.1} parent=1 // pred_check
      _
    $region75: #{edesc_ae_forward.1} parent=1 // pred_check_branch
      %158 = sbr.rel (0) target = $region77
    $region76: #{edesc_ae_forward.1} parent=1 // pred_region
      %159 = dma.done [#allocation15], 2048
    $region77: #{edesc_ae_forward.1} parent=1 // pred_fallthru
      _
    %v160 = vld [vmem:[%s9] sm:$0xff]
    %v161 = vld [vmem:[#allocation2] sm:$0xff]
    %v162 = vld [vmem:[#allocation2 + $0x8] sm:$0xff]
    %v163 = vld [vmem:[#allocation2 + $0x10] sm:$0xff]
    %v164 = vld [vmem:[#allocation2 + $0x18] sm:$0xff]
    %v165 = vld [vmem:[#allocation5] sm:$0xff]
    %v166 = vld [vmem:[#allocation5 + $0x8] sm:$0xff]
    %v167 = vld [vmem:[#allocation5 + $0x10] sm:$0xff]
    %v168 = vld [vmem:[#allocation5 + $0x18] sm:$0xff]
    %v169 = vld [vmem:[#allocation5 + $0x20] sm:$0xff]
    %v170 = vld [vmem:[#allocation5 + $0x28] sm:$0xff]
    %v171 = vld [vmem:[#allocation5 + $0x30] sm:$0xff]
    %v172 = vld [vmem:[#allocation5 + $0x38] sm:$0xff]
    %v173 = vlaneseq
    %v174 = vshrl.u32 %v173, 7
    %v175 = vsub.s32 0, %v174
    %v176 = vrot.slane %v160, %v175
    %vm177 = vcmask 523264
    %v179 = vsel %vm177, %v161, 0
    %v182 = vsel %vm177, %v162, 0
    %v185 = vsel %vm177, %v163, 0
    %v188 = vsel %vm177, %v164, 0
    %190 = vmatprep.subr.mxu0 0.0
    %191 = vmatpush1.msra.mxu0 %v165
    %192 = vmatprep.subr.mxu0 0.0
    %193 = vmatpush1.msra.mxu0 %v166
    %194 = vmatprep.subr.mxu0 0.0
    %195 = vmatpush1.msra.mxu0 %v167
    %196 = vmatprep.subr.mxu0 0.0
    %197 = vmatpush1.msra.mxu0 %v168
    %198 = vmatprep.subr.mxu0 0.0
    %199 = vmatpush1.msra.mxu0 %v169
    %200 = vmatprep.subr.mxu0 0.0
    %201 = vmatpush1.msra.mxu0 %v170
    %202 = vmatprep.subr.mxu0 0.0
    %203 = vmatpush1.msra.mxu0 %v171
    %204 = vmatprep.subr.mxu0 0.0
    %205 = vmatpush1.msra.mxu0 %v172
    %206 = vmatprep.subr.mxu0 0.0
    %207 = vmatpush1.msra.mxu0 0.0
    %208 = vmatprep.subr.mxu0 0.0
    %209 = vmatpush1.msra.mxu0 0.0
    %210 = vmatprep.subr.mxu0 0.0
    %211 = vmatpush1.msra.mxu0 0.0
    %212 = vmatprep.subr.mxu0 0.0
    %213 = vmatpush1.msra.mxu0 0.0
    %214 = vmatprep.subr.mxu0 0.0
    %215 = vmatpush1.msra.mxu0 0.0
    %216 = vmatprep.subr.mxu0 0.0
    %217 = vmatpush1.msra.mxu0 0.0
    %218 = vmatprep.subr.mxu0 0.0
    %219 = vmatpush1.msra.mxu0 0.0
    %220 = vmatprep.subr.mxu0 0.0
    %221 = vmatpush1.msra.mxu0 0.0
    %222 = vmatprep.subr.mxu0 0.0
    %223 = vmatpush1.msra.mxu0 0.0
    %224 = vmatprep.subr.mxu0 0.0
    %225 = vmatpush1.msra.mxu0 0.0
    %226 = vmatprep.subr.mxu0 0.0
    %227 = vmatpush1.msra.mxu0 0.0
    %228 = vmatprep.subr.mxu0 0.0
    %229 = vmatpush1.msra.mxu0 0.0
    %230 = vmatprep.subr.mxu0 0.0
    %231 = vmatpush1.msra.mxu0 0.0
    %232 = vmatprep.subr.mxu0 0.0
    %233 = vmatpush1.msra.mxu0 0.0
    %234 = vmatprep.subr.mxu0 0.0
    %235 = vmatpush1.msra.mxu0 0.0
    %236 = vmatprep.subr.mxu0 0.0
    %237 = vmatpush1.msra.mxu0 0.0
    %238 = vmatprep.subr.mxu0 0.0
    %239 = vmatpush1.msra.mxu0 0.0
    %240 = vmatprep.subr.mxu0 0.0
    %241 = vmatpush1.msra.mxu0 0.0
    %242 = vmatprep.subr.mxu0 0.0
    %243 = vmatpush1.msra.mxu0 0.0
    %244 = vmatprep.subr.mxu0 0.0
    %245 = vmatpush1.msra.mxu0 0.0
    %246 = vmatprep.subr.mxu0 0.0
    %247 = vmatpush1.msra.mxu0 0.0
    %248 = vmatprep.subr.mxu0 0.0
    %249 = vmatpush1.msra.mxu0 0.0
    %250 = vmatprep.subr.mxu0 0.0
    %251 = vmatpush1.msra.mxu0 0.0
    %252 = vmatprep.subr.mxu0 0.0
    %253 = vmatpush1.msra.mxu0 0.0
    %254 = vmatprep.mubr.f32.mxu0 0.0
    %255 = vmatmul.mubr.f32.gmra.mrb[0].mxu0 %v179
    %v256 = vpop.f32.mrb[0].mxu0
    %v257 = vadd.f32 %v176, %v256
    %v258 = vpop.f32.mrb[0].mxu0
    %259 = vmatprep.mubr.f32.mxu0 0.0
    %260 = vmatmul.mubr.f32.gmra.mrb[0].mxu0 %v182
    %v261 = vpop.f32.mrb[0].mxu0
    %v262 = vadd.f32 %v176, %v261
    %v263 = vpop.f32.mrb[0].mxu0
    %264 = vmatprep.mubr.f32.mxu0 0.0
    %265 = vmatmul.mubr.f32.gmra.mrb[0].mxu0 %v185
    %v266 = vpop.f32.mrb[0].mxu0
    %v267 = vadd.f32 %v176, %v266
    %v268 = vpop.f32.mrb[0].mxu0
    %269 = vmatprep.mubr.f32.mxu0 0.0
    %270 = vmatmul.mubr.f32.gmra.mrb[0].mxu0 %v188
    %v271 = vpop.f32.mrb[0].mxu0
    %v272 = vadd.f32 %v176, %v271
    %v273 = vpop.f32.mrb[0].mxu0
    %274 = vdwg.mxu0
    %v275 = vmax.f32 %v257, 0.0
    %v276 = vmax.f32 %v262, 0.0
    %v277 = vmax.f32 %v267, 0.0
    %v278 = vmax.f32 %v272, 0.0
    %v279 = vld [vmem:[#allocation7] sm:$0xff]
    %v280 = vld [vmem:[#allocation7 + $0x8] sm:$0xff]
    %v281 = vld [vmem:[#allocation7 + $0x10] sm:$0xff]
    %v282 = vld [vmem:[#allocation7 + $0x18] sm:$0xff]
    %v283 = vld [vmem:[#allocation7 + $0x20] sm:$0xff]
    %v284 = vld [vmem:[#allocation7 + $0x28] sm:$0xff]
    %v285 = vld [vmem:[#allocation7 + $0x30] sm:$0xff]
    %v286 = vld [vmem:[#allocation7 + $0x38] sm:$0xff]
    %v287 = vld [vmem:[#allocation7 + $0x40] sm:$0xff]
    %v288 = vld [vmem:[#allocation7 + $0x48] sm:$0xff]
    %v289 = vld [vmem:[#allocation7 + $0x50] sm:$0xff]
    %v290 = vld [vmem:[#allocation7 + $0x58] sm:$0xff]
    %v291 = vld [vmem:[#allocation7 + $0x60] sm:$0xff]
    %v292 = vld [vmem:[#allocation7 + $0x68] sm:$0xff]
    %v293 = vld [vmem:[#allocation7 + $0x70] sm:$0xff]
    %v294 = vld [vmem:[#allocation7 + $0x78] sm:$0xff]
    %v295 = vlaneseq
    %v296 = vshrl.u32 %v295, 7
    %v297 = vsub.s32 1, %v296
    %v298 = vrot.slane %v160, %v297
    %299 = vmatprep.subr.mxu0 0.0
    %300 = vmatpush1.msra.mxu0 %v279
    %301 = vmatprep.subr.mxu0 0.0
    %302 = vmatpush1.msra.mxu0 %v280
    %303 = vmatprep.subr.mxu0 0.0
    %304 = vmatpush1.msra.mxu0 %v281
    %305 = vmatprep.subr.mxu0 0.0
    %306 = vmatpush1.msra.mxu0 %v282
    %307 = vmatprep.subr.mxu0 0.0
    %308 = vmatpush1.msra.mxu0 %v283
    %309 = vmatprep.subr.mxu0 0.0
    %310 = vmatpush1.msra.mxu0 %v284
    %311 = vmatprep.subr.mxu0 0.0
    %312 = vmatpush1.msra.mxu0 %v285
    %313 = vmatprep.subr.mxu0 0.0
    %314 = vmatpush1.msra.mxu0 %v286
    %315 = vmatprep.subr.mxu0 0.0
    %316 = vmatpush1.msra.mxu0 %v287
    %317 = vmatprep.subr.mxu0 0.0
    %318 = vmatpush1.msra.mxu0 %v288
    %319 = vmatprep.subr.mxu0 0.0
    %320 = vmatpush1.msra.mxu0 %v289
    %321 = vmatprep.subr.mxu0 0.0
    %322 = vmatpush1.msra.mxu0 %v290
    %323 = vmatprep.subr.mxu0 0.0
    %324 = vmatpush1.msra.mxu0 %v291
    %325 = vmatprep.subr.mxu0 0.0
    %326 = vmatpush1.msra.mxu0 %v292
    %327 = vmatprep.subr.mxu0 0.0
    %328 = vmatpush1.msra.mxu0 %v293
    %329 = vmatprep.subr.mxu0 0.0
    %330 = vmatpush1.msra.mxu0 %v294
    %331 = vmatprep.subr.mxu0 0.0
    %332 = vmatpush1.msra.mxu0 0.0
    %333 = vmatprep.subr.mxu0 0.0
    %334 = vmatpush1.msra.mxu0 0.0
    %335 = vmatprep.subr.mxu0 0.0
    %336 = vmatpush1.msra.mxu0 0.0
    %337 = vmatprep.subr.mxu0 0.0
    %338 = vmatpush1.msra.mxu0 0.0
    %339 = vmatprep.subr.mxu0 0.0
    %340 = vmatpush1.msra.mxu0 0.0
    %341 = vmatprep.subr.mxu0 0.0
    %342 = vmatpush1.msra.mxu0 0.0
    %343 = vmatprep.subr.mxu0 0.0
    %344 = vmatpush1.msra.mxu0 0.0
    %345 = vmatprep.subr.mxu0 0.0
    %346 = vmatpush1.msra.mxu0 0.0
    %347 = vmatprep.subr.mxu0 0.0
    %348 = vmatpush1.msra.mxu0 0.0
    %349 = vmatprep.subr.mxu0 0.0
    %350 = vmatpush1.msra.mxu0 0.0
    %351 = vmatprep.subr.mxu0 0.0
    %352 = vmatpush1.msra.mxu0 0.0
    %353 = vmatprep.subr.mxu0 0.0
    %354 = vmatpush1.msra.mxu0 0.0
    %355 = vmatprep.subr.mxu0 0.0
    %356 = vmatpush1.msra.mxu0 0.0
    %357 = vmatprep.subr.mxu0 0.0
    %358 = vmatpush1.msra.mxu0 0.0
    %359 = vmatprep.subr.mxu0 0.0
    %360 = vmatpush1.msra.mxu0 0.0
    %361 = vmatprep.subr.mxu0 0.0
    %362 = vmatpush1.msra.mxu0 0.0
    %363 = vmatprep.mubr.f32.mxu0 0.0
    %364 = vmatmul.mubr.f32.gmra.mrb[0].mxu0 %v275
    %v365 = vpop.f32.mrb[0].mxu0
    %v366 = vadd.f32 %v298, %v365
    %v367 = vpop.f32.mrb[0].mxu0
    %368 = vmatprep.mubr.f32.mxu0 0.0
    %369 = vmatmul.mubr.f32.gmra.mrb[0].mxu0 %v276
    %v370 = vpop.f32.mrb[0].mxu0
    %v371 = vadd.f32 %v298, %v370
    %v372 = vpop.f32.mrb[0].mxu0
    %373 = vmatprep.mubr.f32.mxu0 0.0
    %374 = vmatmul.mubr.f32.gmra.mrb[0].mxu0 %v277
    %v375 = vpop.f32.mrb[0].mxu0
    %v376 = vadd.f32 %v298, %v375
    %v377 = vpop.f32.mrb[0].mxu0
    %378 = vmatprep.mubr.f32.mxu0 0.0
    %379 = vmatmul.mubr.f32.gmra.mrb[0].mxu0 %v278
    %v380 = vpop.f32.mrb[0].mxu0
    %v381 = vadd.f32 %v298, %v380
    %v382 = vpop.f32.mrb[0].mxu0
    %383 = vdwg.mxu0
    %v384 = vmax.f32 %v366, 0.0
    %v385 = vmax.f32 %v371, 0.0
    %v386 = vmax.f32 %v376, 0.0
    %v387 = vmax.f32 %v381, 0.0
    %v388 = vld [vmem:[#allocation8] sm:$0xff]
    %v389 = vld [vmem:[#allocation8 + $0x8] sm:$0xff]
    %v390 = vld [vmem:[#allocation8 + $0x10] sm:$0xff]
    %v391 = vld [vmem:[#allocation8 + $0x18] sm:$0xff]
    %v392 = vld [vmem:[#allocation8 + $0x20] sm:$0xff]
    %v393 = vld [vmem:[#allocation8 + $0x28] sm:$0xff]
    %v394 = vld [vmem:[#allocation8 + $0x30] sm:$0xff]
    %v395 = vld [vmem:[#allocation8 + $0x38] sm:$0xff]
    %v396 = vld [vmem:[#allocation8 + $0x40] sm:$0xff]
    %v397 = vld [vmem:[#allocation8 + $0x48] sm:$0xff]
    %v398 = vld [vmem:[#allocation8 + $0x50] sm:$0xff]
    %v399 = vld [vmem:[#allocation8 + $0x58] sm:$0xff]
    %v400 = vld [vmem:[#allocation8 + $0x60] sm:$0xff]
    %v401 = vld [vmem:[#allocation8 + $0x68] sm:$0xff]
    %v402 = vld [vmem:[#allocation8 + $0x70] sm:$0xff]
    %v403 = vld [vmem:[#allocation8 + $0x78] sm:$0xff]
    %v404 = vlaneseq
    %v405 = vshrl.u32 %v404, 7
    %v406 = vsub.s32 2, %v405
    %v407 = vrot.slane %v160, %v406
    %408 = vmatprep.subr.mxu0 0.0
    %409 = vmatpush1.msra.mxu0 %v388
    %410 = vmatprep.subr.mxu0 0.0
    %411 = vmatpush1.msra.mxu0 %v389
    %412 = vmatprep.subr.mxu0 0.0
    %413 = vmatpush1.msra.mxu0 %v390
    %414 = vmatprep.subr.mxu0 0.0
    %415 = vmatpush1.msra.mxu0 %v391
    %416 = vmatprep.subr.mxu0 0.0
    %417 = vmatpush1.msra.mxu0 %v392
    %418 = vmatprep.subr.mxu0 0.0
    %419 = vmatpush1.msra.mxu0 %v393
    %420 = vmatprep.subr.mxu0 0.0
    %421 = vmatpush1.msra.mxu0 %v394
    %422 = vmatprep.subr.mxu0 0.0
    %423 = vmatpush1.msra.mxu0 %v395
    %424 = vmatprep.subr.mxu0 0.0
    %425 = vmatpush1.msra.mxu0 %v396
    %426 = vmatprep.subr.mxu0 0.0
    %427 = vmatpush1.msra.mxu0 %v397
    %428 = vmatprep.subr.mxu0 0.0
    %429 = vmatpush1.msra.mxu0 %v398
    %430 = vmatprep.subr.mxu0 0.0
    %431 = vmatpush1.msra.mxu0 %v399
    %432 = vmatprep.subr.mxu0 0.0
    %433 = vmatpush1.msra.mxu0 %v400
    %434 = vmatprep.subr.mxu0 0.0
    %435 = vmatpush1.msra.mxu0 %v401
    %436 = vmatprep.subr.mxu0 0.0
    %437 = vmatpush1.msra.mxu0 %v402
    %438 = vmatprep.subr.mxu0 0.0
    %439 = vmatpush1.msra.mxu0 %v403
    %440 = vmatprep.subr.mxu0 0.0
    %441 = vmatpush1.msra.mxu0 0.0
    %442 = vmatprep.subr.mxu0 0.0
    %443 = vmatpush1.msra.mxu0 0.0
    %444 = vmatprep.subr.mxu0 0.0
    %445 = vmatpush1.msra.mxu0 0.0
    %446 = vmatprep.subr.mxu0 0.0
    %447 = vmatpush1.msra.mxu0 0.0
    %448 = vmatprep.subr.mxu0 0.0
    %449 = vmatpush1.msra.mxu0 0.0
    %450 = vmatprep.subr.mxu0 0.0
    %451 = vmatpush1.msra.mxu0 0.0
    %452 = vmatprep.subr.mxu0 0.0
    %453 = vmatpush1.msra.mxu0 0.0
    %454 = vmatprep.subr.mxu0 0.0
    %455 = vmatpush1.msra.mxu0 0.0
    %456 = vmatprep.subr.mxu0 0.0
    %457 = vmatpush1.msra.mxu0 0.0
    %458 = vmatprep.subr.mxu0 0.0
    %459 = vmatpush1.msra.mxu0 0.0
    %460 = vmatprep.subr.mxu0 0.0
    %461 = vmatpush1.msra.mxu0 0.0
    %462 = vmatprep.subr.mxu0 0.0
    %463 = vmatpush1.msra.mxu0 0.0
    %464 = vmatprep.subr.mxu0 0.0
    %465 = vmatpush1.msra.mxu0 0.0
    %466 = vmatprep.subr.mxu0 0.0
    %467 = vmatpush1.msra.mxu0 0.0
    %468 = vmatprep.subr.mxu0 0.0
    %469 = vmatpush1.msra.mxu0 0.0
    %470 = vmatprep.subr.mxu0 0.0
    %471 = vmatpush1.msra.mxu0 0.0
    %472 = vmatprep.mubr.f32.mxu0 0.0
    %473 = vmatmul.mubr.f32.gmra.mrb[0].mxu0 %v384
    %v474 = vpop.f32.mrb[0].mxu0
    %v475 = vadd.f32 %v407, %v474
    %v476 = vpop.f32.mrb[0].mxu0
    %477 = vmatprep.mubr.f32.mxu0 0.0
    %478 = vmatmul.mubr.f32.gmra.mrb[0].mxu0 %v385
    %v479 = vpop.f32.mrb[0].mxu0
    %v480 = vadd.f32 %v407, %v479
    %v481 = vpop.f32.mrb[0].mxu0
    %482 = vmatprep.mubr.f32.mxu0 0.0
    %483 = vmatmul.mubr.f32.gmra.mrb[0].mxu0 %v386
    %v484 = vpop.f32.mrb[0].mxu0
    %v485 = vadd.f32 %v407, %v484
    %v486 = vpop.f32.mrb[0].mxu0
    %487 = vmatprep.mubr.f32.mxu0 0.0
    %488 = vmatmul.mubr.f32.gmra.mrb[0].mxu0 %v387
    %v489 = vpop.f32.mrb[0].mxu0
    %v490 = vadd.f32 %v407, %v489
    %v491 = vpop.f32.mrb[0].mxu0
    %492 = vdwg.mxu0
    %v493 = vmax.f32 %v475, 0.0
    %v494 = vmax.f32 %v480, 0.0
    %v495 = vmax.f32 %v485, 0.0
    %v496 = vmax.f32 %v490, 0.0
    %v497 = vld [vmem:[#allocation10] sm:$0xff]
    %v498 = vld [vmem:[#allocation10 + $0x8] sm:$0xff]
    %v499 = vld [vmem:[#allocation10 + $0x10] sm:$0xff]
    %v500 = vld [vmem:[#allocation10 + $0x18] sm:$0xff]
    %v501 = vld [vmem:[#allocation10 + $0x20] sm:$0xff]
    %v502 = vld [vmem:[#allocation10 + $0x28] sm:$0xff]
    %v503 = vld [vmem:[#allocation10 + $0x30] sm:$0xff]
    %v504 = vld [vmem:[#allocation10 + $0x38] sm:$0xff]
    %v505 = vld [vmem:[#allocation10 + $0x40] sm:$0xff]
    %v506 = vld [vmem:[#allocation10 + $0x48] sm:$0xff]
    %v507 = vld [vmem:[#allocation10 + $0x50] sm:$0xff]
    %v508 = vld [vmem:[#allocation10 + $0x58] sm:$0xff]
    %v509 = vld [vmem:[#allocation10 + $0x60] sm:$0xff]
    %v510 = vld [vmem:[#allocation10 + $0x68] sm:$0xff]
    %v511 = vld [vmem:[#allocation10 + $0x70] sm:$0xff]
    %v512 = vld [vmem:[#allocation10 + $0x78] sm:$0xff]
    %v513 = vlaneseq
    %v514 = vshrl.u32 %v513, 7
    %v515 = vsub.s32 3, %v514
    %v516 = vrot.slane %v160, %v515
    %517 = vmatprep.subr.mxu0 0.0
    %518 = vmatpush1.msra.mxu0 %v497
    %519 = vmatprep.subr.mxu0 0.0
    %520 = vmatpush1.msra.mxu0 %v498
    %521 = vmatprep.subr.mxu0 0.0
    %522 = vmatpush1.msra.mxu0 %v499
    %523 = vmatprep.subr.mxu0 0.0
    %524 = vmatpush1.msra.mxu0 %v500
    %525 = vmatprep.subr.mxu0 0.0
    %526 = vmatpush1.msra.mxu0 %v501
    %527 = vmatprep.subr.mxu0 0.0
    %528 = vmatpush1.msra.mxu0 %v502
    %529 = vmatprep.subr.mxu0 0.0
    %530 = vmatpush1.msra.mxu0 %v503
    %531 = vmatprep.subr.mxu0 0.0
    %532 = vmatpush1.msra.mxu0 %v504
    %533 = vmatprep.subr.mxu0 0.0
    %534 = vmatpush1.msra.mxu0 %v505
    %535 = vmatprep.subr.mxu0 0.0
    %536 = vmatpush1.msra.mxu0 %v506
    %537 = vmatprep.subr.mxu0 0.0
    %538 = vmatpush1.msra.mxu0 %v507
    %539 = vmatprep.subr.mxu0 0.0
    %540 = vmatpush1.msra.mxu0 %v508
    %541 = vmatprep.subr.mxu0 0.0
    %542 = vmatpush1.msra.mxu0 %v509
    %543 = vmatprep.subr.mxu0 0.0
    %544 = vmatpush1.msra.mxu0 %v510
    %545 = vmatprep.subr.mxu0 0.0
    %546 = vmatpush1.msra.mxu0 %v511
    %547 = vmatprep.subr.mxu0 0.0
    %548 = vmatpush1.msra.mxu0 %v512
    %549 = vmatprep.subr.mxu0 0.0
    %550 = vmatpush1.msra.mxu0 0.0
    %551 = vmatprep.subr.mxu0 0.0
    %552 = vmatpush1.msra.mxu0 0.0
    %553 = vmatprep.subr.mxu0 0.0
    %554 = vmatpush1.msra.mxu0 0.0
    %555 = vmatprep.subr.mxu0 0.0
    %556 = vmatpush1.msra.mxu0 0.0
    %557 = vmatprep.subr.mxu0 0.0
    %558 = vmatpush1.msra.mxu0 0.0
    %559 = vmatprep.subr.mxu0 0.0
    %560 = vmatpush1.msra.mxu0 0.0
    %561 = vmatprep.subr.mxu0 0.0
    %562 = vmatpush1.msra.mxu0 0.0
    %563 = vmatprep.subr.mxu0 0.0
    %564 = vmatpush1.msra.mxu0 0.0
    %565 = vmatprep.subr.mxu0 0.0
    %566 = vmatpush1.msra.mxu0 0.0
    %567 = vmatprep.subr.mxu0 0.0
    %568 = vmatpush1.msra.mxu0 0.0
    %569 = vmatprep.subr.mxu0 0.0
    %570 = vmatpush1.msra.mxu0 0.0
    %571 = vmatprep.subr.mxu0 0.0
    %572 = vmatpush1.msra.mxu0 0.0
    %573 = vmatprep.subr.mxu0 0.0
    %574 = vmatpush1.msra.mxu0 0.0
    %575 = vmatprep.subr.mxu0 0.0
    %576 = vmatpush1.msra.mxu0 0.0
    %577 = vmatprep.subr.mxu0 0.0
    %578 = vmatpush1.msra.mxu0 0.0
    %579 = vmatprep.subr.mxu0 0.0
    %580 = vmatpush1.msra.mxu0 0.0
    %581 = vmatprep.mubr.f32.mxu0 0.0
    %582 = vmatmul.mubr.f32.gmra.mrb[0].mxu0 %v493
    %v583 = vpop.f32.mrb[0].mxu0
    %v584 = vadd.f32 %v516, %v583
    %v585 = vpop.f32.mrb[0].mxu0
    %586 = vmatprep.mubr.f32.mxu0 0.0
    %587 = vmatmul.mubr.f32.gmra.mrb[0].mxu0 %v494
    %v588 = vpop.f32.mrb[0].mxu0
    %v589 = vadd.f32 %v516, %v588
    %v590 = vpop.f32.mrb[0].mxu0
    %591 = vmatprep.mubr.f32.mxu0 0.0
    %592 = vmatmul.mubr.f32.gmra.mrb[0].mxu0 %v495
    %v593 = vpop.f32.mrb[0].mxu0
    %v594 = vadd.f32 %v516, %v593
    %v595 = vpop.f32.mrb[0].mxu0
    %596 = vmatprep.mubr.f32.mxu0 0.0
    %597 = vmatmul.mubr.f32.gmra.mrb[0].mxu0 %v496
    %v598 = vpop.f32.mrb[0].mxu0
    %v599 = vadd.f32 %v516, %v598
    %v600 = vpop.f32.mrb[0].mxu0
    %601 = vdwg.mxu0
    %602 = vst [vmem:[%s11] sm:$0xff] %v584
    %603 = vst [vmem:[%s11 + $0x8] sm:$0xff] %v589
    %604 = vst [vmem:[%s11 + $0x10] sm:$0xff] %v594
    %605 = vst [vmem:[%s11 + $0x18] sm:$0xff] %v599
    %v606 = vld [vmem:[#allocation11] sm:$0xff]
    %v607 = vld [vmem:[#allocation11 + $0x8] sm:$0xff]
    %v608 = vld [vmem:[#allocation11 + $0x10] sm:$0xff]
    %v609 = vld [vmem:[#allocation11 + $0x18] sm:$0xff]
    %v610 = vld [vmem:[#allocation11 + $0x20] sm:$0xff]
    %v611 = vld [vmem:[#allocation11 + $0x28] sm:$0xff]
    %v612 = vld [vmem:[#allocation11 + $0x30] sm:$0xff]
    %v613 = vld [vmem:[#allocation11 + $0x38] sm:$0xff]
    %v614 = vld [vmem:[#allocation11 + $0x40] sm:$0xff]
    %v615 = vld [vmem:[#allocation11 + $0x48] sm:$0xff]
    %v616 = vld [vmem:[#allocation11 + $0x50] sm:$0xff]
    %v617 = vld [vmem:[#allocation11 + $0x58] sm:$0xff]
    %v618 = vld [vmem:[#allocation11 + $0x60] sm:$0xff]
    %v619 = vld [vmem:[#allocation11 + $0x68] sm:$0xff]
    %v620 = vld [vmem:[#allocation11 + $0x70] sm:$0xff]
    %v621 = vld [vmem:[#allocation11 + $0x78] sm:$0xff]
    %v622 = vlaneseq
    %v623 = vshrl.u32 %v622, 7
    %v624 = vsub.s32 4, %v623
    %v625 = vrot.slane %v160, %v624
    %626 = vmatprep.subr.mxu0 0.0
    %627 = vmatpush1.msra.mxu0 %v606
    %628 = vmatprep.subr.mxu0 0.0
    %629 = vmatpush1.msra.mxu0 %v607
    %630 = vmatprep.subr.mxu0 0.0
    %631 = vmatpush1.msra.mxu0 %v608
    %632 = vmatprep.subr.mxu0 0.0
    %633 = vmatpush1.msra.mxu0 %v609
    %634 = vmatprep.subr.mxu0 0.0
    %635 = vmatpush1.msra.mxu0 %v610
    %636 = vmatprep.subr.mxu0 0.0
    %637 = vmatpush1.msra.mxu0 %v611
    %638 = vmatprep.subr.mxu0 0.0
    %639 = vmatpush1.msra.mxu0 %v612
    %640 = vmatprep.subr.mxu0 0.0
    %641 = vmatpush1.msra.mxu0 %v613
    %642 = vmatprep.subr.mxu0 0.0
    %643 = vmatpush1.msra.mxu0 %v614
    %644 = vmatprep.subr.mxu0 0.0
    %645 = vmatpush1.msra.mxu0 %v615
    %646 = vmatprep.subr.mxu0 0.0
    %647 = vmatpush1.msra.mxu0 %v616
    %648 = vmatprep.subr.mxu0 0.0
    %649 = vmatpush1.msra.mxu0 %v617
    %650 = vmatprep.subr.mxu0 0.0
    %651 = vmatpush1.msra.mxu0 %v618
    %652 = vmatprep.subr.mxu0 0.0
    %653 = vmatpush1.msra.mxu0 %v619
    %654 = vmatprep.subr.mxu0 0.0
    %655 = vmatpush1.msra.mxu0 %v620
    %656 = vmatprep.subr.mxu0 0.0
    %657 = vmatpush1.msra.mxu0 %v621
    %658 = vmatprep.subr.mxu0 0.0
    %659 = vmatpush1.msra.mxu0 0.0
    %660 = vmatprep.subr.mxu0 0.0
    %661 = vmatpush1.msra.mxu0 0.0
    %662 = vmatprep.subr.mxu0 0.0
    %663 = vmatpush1.msra.mxu0 0.0
    %664 = vmatprep.subr.mxu0 0.0
    %665 = vmatpush1.msra.mxu0 0.0
    %666 = vmatprep.subr.mxu0 0.0
    %667 = vmatpush1.msra.mxu0 0.0
    %668 = vmatprep.subr.mxu0 0.0
    %669 = vmatpush1.msra.mxu0 0.0
    %670 = vmatprep.subr.mxu0 0.0
    %671 = vmatpush1.msra.mxu0 0.0
    %672 = vmatprep.subr.mxu0 0.0
    %673 = vmatpush1.msra.mxu0 0.0
    %674 = vmatprep.subr.mxu0 0.0
    %675 = vmatpush1.msra.mxu0 0.0
    %676 = vmatprep.subr.mxu0 0.0
    %677 = vmatpush1.msra.mxu0 0.0
    %678 = vmatprep.subr.mxu0 0.0
    %679 = vmatpush1.msra.mxu0 0.0
    %680 = vmatprep.subr.mxu0 0.0
    %681 = vmatpush1.msra.mxu0 0.0
    %682 = vmatprep.subr.mxu0 0.0
    %683 = vmatpush1.msra.mxu0 0.0
    %684 = vmatprep.subr.mxu0 0.0
    %685 = vmatpush1.msra.mxu0 0.0
    %686 = vmatprep.subr.mxu0 0.0
    %687 = vmatpush1.msra.mxu0 0.0
    %688 = vmatprep.subr.mxu0 0.0
    %689 = vmatpush1.msra.mxu0 0.0
    %690 = vmatprep.mubr.f32.mxu0 0.0
    %691 = vmatmul.mubr.f32.gmra.mrb[0].mxu0 %v584
    %v692 = vpop.f32.mrb[0].mxu0
    %v693 = vadd.f32 %v625, %v692
    %v694 = vpop.f32.mrb[0].mxu0
    %695 = vmatprep.mubr.f32.mxu0 0.0
    %696 = vmatmul.mubr.f32.gmra.mrb[0].mxu0 %v589
    %v697 = vpop.f32.mrb[0].mxu0
    %v698 = vadd.f32 %v625, %v697
    %v699 = vpop.f32.mrb[0].mxu0
    %700 = vmatprep.mubr.f32.mxu0 0.0
    %701 = vmatmul.mubr.f32.gmra.mrb[0].mxu0 %v594
    %v702 = vpop.f32.mrb[0].mxu0
    %v703 = vadd.f32 %v625, %v702
    %v704 = vpop.f32.mrb[0].mxu0
    %705 = vmatprep.mubr.f32.mxu0 0.0
    %706 = vmatmul.mubr.f32.gmra.mrb[0].mxu0 %v599
    %v707 = vpop.f32.mrb[0].mxu0
    %v708 = vadd.f32 %v625, %v707
    %v709 = vpop.f32.mrb[0].mxu0
    %710 = vdwg.mxu0
    %v711 = vmax.f32 %v693, 0.0
    %v712 = vmax.f32 %v698, 0.0
    %v713 = vmax.f32 %v703, 0.0
    %v714 = vmax.f32 %v708, 0.0
    %v715 = vld [vmem:[#allocation13] sm:$0xff]
    %v716 = vld [vmem:[#allocation13 + $0x8] sm:$0xff]
    %v717 = vld [vmem:[#allocation13 + $0x10] sm:$0xff]
    %v718 = vld [vmem:[#allocation13 + $0x18] sm:$0xff]
    %v719 = vld [vmem:[#allocation13 + $0x20] sm:$0xff]
    %v720 = vld [vmem:[#allocation13 + $0x28] sm:$0xff]
    %v721 = vld [vmem:[#allocation13 + $0x30] sm:$0xff]
    %v722 = vld [vmem:[#allocation13 + $0x38] sm:$0xff]
    %v723 = vld [vmem:[#allocation13 + $0x40] sm:$0xff]
    %v724 = vld [vmem:[#allocation13 + $0x48] sm:$0xff]
    %v725 = vld [vmem:[#allocation13 + $0x50] sm:$0xff]
    %v726 = vld [vmem:[#allocation13 + $0x58] sm:$0xff]
    %v727 = vld [vmem:[#allocation13 + $0x60] sm:$0xff]
    %v728 = vld [vmem:[#allocation13 + $0x68] sm:$0xff]
    %v729 = vld [vmem:[#allocation13 + $0x70] sm:$0xff]
    %v730 = vld [vmem:[#allocation13 + $0x78] sm:$0xff]
    %v731 = vlaneseq
    %v732 = vshrl.u32 %v731, 7
    %v733 = vsub.s32 5, %v732
    %v734 = vrot.slane %v160, %v733
    %735 = vmatprep.subr.mxu0 0.0
    %736 = vmatpush1.msra.mxu0 %v715
    %737 = vmatprep.subr.mxu0 0.0
    %738 = vmatpush1.msra.mxu0 %v716
    %739 = vmatprep.subr.mxu0 0.0
    %740 = vmatpush1.msra.mxu0 %v717
    %741 = vmatprep.subr.mxu0 0.0
    %742 = vmatpush1.msra.mxu0 %v718
    %743 = vmatprep.subr.mxu0 0.0
    %744 = vmatpush1.msra.mxu0 %v719
    %745 = vmatprep.subr.mxu0 0.0
    %746 = vmatpush1.msra.mxu0 %v720
    %747 = vmatprep.subr.mxu0 0.0
    %748 = vmatpush1.msra.mxu0 %v721
    %749 = vmatprep.subr.mxu0 0.0
    %750 = vmatpush1.msra.mxu0 %v722
    %751 = vmatprep.subr.mxu0 0.0
    %752 = vmatpush1.msra.mxu0 %v723
    %753 = vmatprep.subr.mxu0 0.0
    %754 = vmatpush1.msra.mxu0 %v724
    %755 = vmatprep.subr.mxu0 0.0
    %756 = vmatpush1.msra.mxu0 %v725
    %757 = vmatprep.subr.mxu0 0.0
    %758 = vmatpush1.msra.mxu0 %v726
    %759 = vmatprep.subr.mxu0 0.0
    %760 = vmatpush1.msra.mxu0 %v727
    %761 = vmatprep.subr.mxu0 0.0
    %762 = vmatpush1.msra.mxu0 %v728
    %763 = vmatprep.subr.mxu0 0.0
    %764 = vmatpush1.msra.mxu0 %v729
    %765 = vmatprep.subr.mxu0 0.0
    %766 = vmatpush1.msra.mxu0 %v730
    %767 = vmatprep.subr.mxu0 0.0
    %768 = vmatpush1.msra.mxu0 0.0
    %769 = vmatprep.subr.mxu0 0.0
    %770 = vmatpush1.msra.mxu0 0.0
    %771 = vmatprep.subr.mxu0 0.0
    %772 = vmatpush1.msra.mxu0 0.0
    %773 = vmatprep.subr.mxu0 0.0
    %774 = vmatpush1.msra.mxu0 0.0
    %775 = vmatprep.subr.mxu0 0.0
    %776 = vmatpush1.msra.mxu0 0.0
    %777 = vmatprep.subr.mxu0 0.0
    %778 = vmatpush1.msra.mxu0 0.0
    %779 = vmatprep.subr.mxu0 0.0
    %780 = vmatpush1.msra.mxu0 0.0
    %781 = vmatprep.subr.mxu0 0.0
    %782 = vmatpush1.msra.mxu0 0.0
    %783 = vmatprep.subr.mxu0 0.0
    %784 = vmatpush1.msra.mxu0 0.0
    %785 = vmatprep.subr.mxu0 0.0
    %786 = vmatpush1.msra.mxu0 0.0
    %787 = vmatprep.subr.mxu0 0.0
    %788 = vmatpush1.msra.mxu0 0.0
    %789 = vmatprep.subr.mxu0 0.0
    %790 = vmatpush1.msra.mxu0 0.0
    %791 = vmatprep.subr.mxu0 0.0
    %792 = vmatpush1.msra.mxu0 0.0
    %793 = vmatprep.subr.mxu0 0.0
    %794 = vmatpush1.msra.mxu0 0.0
    %795 = vmatprep.subr.mxu0 0.0
    %796 = vmatpush1.msra.mxu0 0.0
    %797 = vmatprep.subr.mxu0 0.0
    %798 = vmatpush1.msra.mxu0 0.0
    %799 = vmatprep.mubr.f32.mxu0 0.0
    %800 = vmatmul.mubr.f32.gmra.mrb[0].mxu0 %v711
    %v801 = vpop.f32.mrb[0].mxu0
    %v802 = vadd.f32 %v734, %v801
    %v803 = vpop.f32.mrb[0].mxu0
    %804 = vmatprep.mubr.f32.mxu0 0.0
    %805 = vmatmul.mubr.f32.gmra.mrb[0].mxu0 %v712
    %v806 = vpop.f32.mrb[0].mxu0
    %v807 = vadd.f32 %v734, %v806
    %v808 = vpop.f32.mrb[0].mxu0
    %809 = vmatprep.mubr.f32.mxu0 0.0
    %810 = vmatmul.mubr.f32.gmra.mrb[0].mxu0 %v713
    %v811 = vpop.f32.mrb[0].mxu0
    %v812 = vadd.f32 %v734, %v811
    %v813 = vpop.f32.mrb[0].mxu0
    %814 = vmatprep.mubr.f32.mxu0 0.0
    %815 = vmatmul.mubr.f32.gmra.mrb[0].mxu0 %v714
    %v816 = vpop.f32.mrb[0].mxu0
    %v817 = vadd.f32 %v734, %v816
    %v818 = vpop.f32.mrb[0].mxu0
    %819 = vdwg.mxu0
    %v820 = vmax.f32 %v802, 0.0
    %v821 = vmax.f32 %v807, 0.0
    %v822 = vmax.f32 %v812, 0.0
    %v823 = vmax.f32 %v817, 0.0
    %v824 = vld [vmem:[#allocation14] sm:$0xff]
    %v825 = vld [vmem:[#allocation14 + $0x8] sm:$0xff]
    %v826 = vld [vmem:[#allocation14 + $0x10] sm:$0xff]
    %v827 = vld [vmem:[#allocation14 + $0x18] sm:$0xff]
    %v828 = vld [vmem:[#allocation14 + $0x20] sm:$0xff]
    %v829 = vld [vmem:[#allocation14 + $0x28] sm:$0xff]
    %v830 = vld [vmem:[#allocation14 + $0x30] sm:$0xff]
    %v831 = vld [vmem:[#allocation14 + $0x38] sm:$0xff]
    %v832 = vld [vmem:[#allocation14 + $0x40] sm:$0xff]
    %v833 = vld [vmem:[#allocation14 + $0x48] sm:$0xff]
    %v834 = vld [vmem:[#allocation14 + $0x50] sm:$0xff]
    %v835 = vld [vmem:[#allocation14 + $0x58] sm:$0xff]
    %v836 = vld [vmem:[#allocation14 + $0x60] sm:$0xff]
    %v837 = vld [vmem:[#allocation14 + $0x68] sm:$0xff]
    %v838 = vld [vmem:[#allocation14 + $0x70] sm:$0xff]
    %v839 = vld [vmem:[#allocation14 + $0x78] sm:$0xff]
    %v840 = vlaneseq
    %v841 = vshrl.u32 %v840, 7
    %v842 = vsub.s32 6, %v841
    %v843 = vrot.slane %v160, %v842
    %844 = vmatprep.subr.mxu0 0.0
    %845 = vmatpush1.msra.mxu0 %v824
    %846 = vmatprep.subr.mxu0 0.0
    %847 = vmatpush1.msra.mxu0 %v825
    %848 = vmatprep.subr.mxu0 0.0
    %849 = vmatpush1.msra.mxu0 %v826
    %850 = vmatprep.subr.mxu0 0.0
    %851 = vmatpush1.msra.mxu0 %v827
    %852 = vmatprep.subr.mxu0 0.0
    %853 = vmatpush1.msra.mxu0 %v828
    %854 = vmatprep.subr.mxu0 0.0
    %855 = vmatpush1.msra.mxu0 %v829
    %856 = vmatprep.subr.mxu0 0.0
    %857 = vmatpush1.msra.mxu0 %v830
    %858 = vmatprep.subr.mxu0 0.0
    %859 = vmatpush1.msra.mxu0 %v831
    %860 = vmatprep.subr.mxu0 0.0
    %861 = vmatpush1.msra.mxu0 %v832
    %862 = vmatprep.subr.mxu0 0.0
    %863 = vmatpush1.msra.mxu0 %v833
    %864 = vmatprep.subr.mxu0 0.0
    %865 = vmatpush1.msra.mxu0 %v834
    %866 = vmatprep.subr.mxu0 0.0
    %867 = vmatpush1.msra.mxu0 %v835
    %868 = vmatprep.subr.mxu0 0.0
    %869 = vmatpush1.msra.mxu0 %v836
    %870 = vmatprep.subr.mxu0 0.0
    %871 = vmatpush1.msra.mxu0 %v837
    %872 = vmatprep.subr.mxu0 0.0
    %873 = vmatpush1.msra.mxu0 %v838
    %874 = vmatprep.subr.mxu0 0.0
    %875 = vmatpush1.msra.mxu0 %v839
    %876 = vmatprep.subr.mxu0 0.0
    %877 = vmatpush1.msra.mxu0 0.0
    %878 = vmatprep.subr.mxu0 0.0
    %879 = vmatpush1.msra.mxu0 0.0
    %880 = vmatprep.subr.mxu0 0.0
    %881 = vmatpush1.msra.mxu0 0.0
    %882 = vmatprep.subr.mxu0 0.0
    %883 = vmatpush1.msra.mxu0 0.0
    %884 = vmatprep.subr.mxu0 0.0
    %885 = vmatpush1.msra.mxu0 0.0
    %886 = vmatprep.subr.mxu0 0.0
    %887 = vmatpush1.msra.mxu0 0.0
    %888 = vmatprep.subr.mxu0 0.0
    %889 = vmatpush1.msra.mxu0 0.0
    %890 = vmatprep.subr.mxu0 0.0
    %891 = vmatpush1.msra.mxu0 0.0
    %892 = vmatprep.subr.mxu0 0.0
    %893 = vmatpush1.msra.mxu0 0.0
    %894 = vmatprep.subr.mxu0 0.0
    %895 = vmatpush1.msra.mxu0 0.0
    %896 = vmatprep.subr.mxu0 0.0
    %897 = vmatpush1.msra.mxu0 0.0
    %898 = vmatprep.subr.mxu0 0.0
    %899 = vmatpush1.msra.mxu0 0.0
    %900 = vmatprep.subr.mxu0 0.0
    %901 = vmatpush1.msra.mxu0 0.0
    %902 = vmatprep.subr.mxu0 0.0
    %903 = vmatpush1.msra.mxu0 0.0
    %904 = vmatprep.subr.mxu0 0.0
    %905 = vmatpush1.msra.mxu0 0.0
    %906 = vmatprep.subr.mxu0 0.0
    %907 = vmatpush1.msra.mxu0 0.0
    %908 = vmatprep.mubr.f32.mxu0 0.0
    %909 = vmatmul.mubr.f32.gmra.mrb[0].mxu0 %v820
    %v910 = vpop.f32.mrb[0].mxu0
    %v911 = vadd.f32 %v843, %v910
    %v912 = vpop.f32.mrb[0].mxu0
    %913 = vmatprep.mubr.f32.mxu0 0.0
    %914 = vmatmul.mubr.f32.gmra.mrb[0].mxu0 %v821
    %v915 = vpop.f32.mrb[0].mxu0
    %v916 = vadd.f32 %v843, %v915
    %v917 = vpop.f32.mrb[0].mxu0
    %918 = vmatprep.mubr.f32.mxu0 0.0
    %919 = vmatmul.mubr.f32.gmra.mrb[0].mxu0 %v822
    %v920 = vpop.f32.mrb[0].mxu0
    %v921 = vadd.f32 %v843, %v920
    %v922 = vpop.f32.mrb[0].mxu0
    %923 = vmatprep.mubr.f32.mxu0 0.0
    %924 = vmatmul.mubr.f32.gmra.mrb[0].mxu0 %v823
    %v925 = vpop.f32.mrb[0].mxu0
    %v926 = vadd.f32 %v843, %v925
    %v927 = vpop.f32.mrb[0].mxu0
    %928 = vdwg.mxu0
    %v929 = vmax.f32 %v911, 0.0
    %v930 = vmax.f32 %v916, 0.0
    %v931 = vmax.f32 %v921, 0.0
    %v932 = vmax.f32 %v926, 0.0
    %v933 = vld [vmem:[#allocation16] sm:$0xff]
    %v934 = vld [vmem:[#allocation16 + $0x8] sm:$0xff]
    %v935 = vld [vmem:[#allocation16 + $0x10] sm:$0xff]
    %v936 = vld [vmem:[#allocation16 + $0x18] sm:$0xff]
    %v937 = vld [vmem:[#allocation16 + $0x20] sm:$0xff]
    %v938 = vld [vmem:[#allocation16 + $0x28] sm:$0xff]
    %v939 = vld [vmem:[#allocation16 + $0x30] sm:$0xff]
    %v940 = vld [vmem:[#allocation16 + $0x38] sm:$0xff]
    %v941 = vld [vmem:[#allocation16 + $0x40] sm:$0xff]
    %v942 = vld [vmem:[#allocation16 + $0x48] sm:$0xff]
    %v943 = vld [vmem:[#allocation16 + $0x50] sm:$0xff]
    %v944 = vld [vmem:[#allocation16 + $0x58] sm:$0xff]
    %v945 = vld [vmem:[#allocation16 + $0x60] sm:$0xff]
    %v946 = vld [vmem:[#allocation16 + $0x68] sm:$0xff]
    %v947 = vld [vmem:[#allocation16 + $0x70] sm:$0xff]
    %v948 = vld [vmem:[#allocation16 + $0x78] sm:$0xff]
    %v949 = vlaneseq
    %v950 = vshrl.u32 %v949, 7
    %v951 = vsub.s32 7, %v950
    %v952 = vrot.slane %v160, %v951
    %953 = vmatprep.subr.mxu0 0.0
    %954 = vmatpush1.msra.mxu0 %v933
    %955 = vmatprep.subr.mxu0 0.0
    %956 = vmatpush1.msra.mxu0 %v934
    %957 = vmatprep.subr.mxu0 0.0
    %958 = vmatpush1.msra.mxu0 %v935
    %959 = vmatprep.subr.mxu0 0.0
    %960 = vmatpush1.msra.mxu0 %v936
    %961 = vmatprep.subr.mxu0 0.0
    %962 = vmatpush1.msra.mxu0 %v937
    %963 = vmatprep.subr.mxu0 0.0
    %964 = vmatpush1.msra.mxu0 %v938
    %965 = vmatprep.subr.mxu0 0.0
    %966 = vmatpush1.msra.mxu0 %v939
    %967 = vmatprep.subr.mxu0 0.0
    %968 = vmatpush1.msra.mxu0 %v940
    %969 = vmatprep.subr.mxu0 0.0
    %970 = vmatpush1.msra.mxu0 %v941
    %971 = vmatprep.subr.mxu0 0.0
    %972 = vmatpush1.msra.mxu0 %v942
    %973 = vmatprep.subr.mxu0 0.0
    %974 = vmatpush1.msra.mxu0 %v943
    %975 = vmatprep.subr.mxu0 0.0
    %976 = vmatpush1.msra.mxu0 %v944
    %977 = vmatprep.subr.mxu0 0.0
    %978 = vmatpush1.msra.mxu0 %v945
    %979 = vmatprep.subr.mxu0 0.0
    %980 = vmatpush1.msra.mxu0 %v946
    %981 = vmatprep.subr.mxu0 0.0
    %982 = vmatpush1.msra.mxu0 %v947
    %983 = vmatprep.subr.mxu0 0.0
    %984 = vmatpush1.msra.mxu0 %v948
    %985 = vmatprep.subr.mxu0 0.0
    %986 = vmatpush1.msra.mxu0 0.0
    %987 = vmatprep.subr.mxu0 0.0
    %988 = vmatpush1.msra.mxu0 0.0
    %989 = vmatprep.subr.mxu0 0.0
    %990 = vmatpush1.msra.mxu0 0.0
    %991 = vmatprep.subr.mxu0 0.0
    %992 = vmatpush1.msra.mxu0 0.0
    %993 = vmatprep.subr.mxu0 0.0
    %994 = vmatpush1.msra.mxu0 0.0
    %995 = vmatprep.subr.mxu0 0.0
    %996 = vmatpush1.msra.mxu0 0.0
    %997 = vmatprep.subr.mxu0 0.0
    %998 = vmatpush1.msra.mxu0 0.0
    %999 = vmatprep.subr.mxu0 0.0
    %1000 = vmatpush1.msra.mxu0 0.0
    %1001 = vmatprep.subr.mxu0 0.0
    %1002 = vmatpush1.msra.mxu0 0.0
    %1003 = vmatprep.subr.mxu0 0.0
    %1004 = vmatpush1.msra.mxu0 0.0
    %1005 = vmatprep.subr.mxu0 0.0
    %1006 = vmatpush1.msra.mxu0 0.0
    %1007 = vmatprep.subr.mxu0 0.0
    %1008 = vmatpush1.msra.mxu0 0.0
    %1009 = vmatprep.subr.mxu0 0.0
    %1010 = vmatpush1.msra.mxu0 0.0
    %1011 = vmatprep.subr.mxu0 0.0
    %1012 = vmatpush1.msra.mxu0 0.0
    %1013 = vmatprep.subr.mxu0 0.0
    %1014 = vmatpush1.msra.mxu0 0.0
    %1015 = vmatprep.subr.mxu0 0.0
    %1016 = vmatpush1.msra.mxu0 0.0
    %1017 = vmatprep.mubr.f32.mxu0 0.0
    %1018 = vmatmul.mubr.f32.gmra.mrb[0].mxu0 %v929
    %v1019 = vpop.f32.mrb[0].mxu0
    %v1020 = vadd.f32 %v952, %v1019
    %v1021 = vpop.f32.mrb[0].mxu0
    %1022 = vmatprep.mubr.f32.mxu0 0.0
    %1023 = vmatmul.mubr.f32.gmra.mrb[0].mxu0 %v930
    %v1024 = vpop.f32.mrb[0].mxu0
    %v1025 = vadd.f32 %v952, %v1024
    %v1026 = vpop.f32.mrb[0].mxu0
    %1027 = vmatprep.mubr.f32.mxu0 0.0
    %1028 = vmatmul.mubr.f32.gmra.mrb[0].mxu0 %v931
    %v1029 = vpop.f32.mrb[0].mxu0
    %v1030 = vadd.f32 %v952, %v1029
    %v1031 = vpop.f32.mrb[0].mxu0
    %1032 = vmatprep.mubr.f32.mxu0 0.0
    %1033 = vmatmul.mubr.f32.gmra.mrb[0].mxu0 %v932
    %v1034 = vpop.f32.mrb[0].mxu0
    %v1035 = vadd.f32 %v952, %v1034
    %v1036 = vpop.f32.mrb[0].mxu0
    %1037 = vdwg.mxu0
    %1038 = vst [vmem:[#allocation17] sm:$0xff] %v1020
    %1039 = vst [vmem:[#allocation17 + $0x8] sm:$0xff] %v1025
    %1040 = vst [vmem:[#allocation17 + $0x10] sm:$0xff] %v1030
    %1041 = vst [vmem:[#allocation17 + $0x18] sm:$0xff] %v1035
    // Predicated region
    $region78: #{edesc_ae_forward.1} parent=1 // pred_check
      _
    $region79: #{edesc_ae_forward.1} parent=1 // pred_check_branch
      %1043 = sbr.rel (0) target = $region81
    $region80: #{edesc_ae_forward.1} parent=1 // pred_region
      %s1045 = ssub.s32 512, 512
      %1046 = vsyncadd [#allocation4], %s1045
      %s1047 = sshll.u32 [#allocation17], 4
      %s1048 = int_to_ptr.vmem [resolvable:$true] %s1047
      %1053 = dma.vmem_to_hbm [thread:$0]  %s1048, 512, %s10, [#allocation4], 128, 128, 8
    $region81: #{edesc_ae_forward.1} parent=1 // pred_fallthru
      _
    // Predicated region
    $region82: #{edesc_ae_forward.1} parent=1 // pred_check
      _
    $region83: #{edesc_ae_forward.1} parent=1 // pred_check_branch
      %1055 = sbr.rel (0) target = $region85
    $region84: #{edesc_ae_forward.1} parent=1 // pred_region
      _
    $region85: #{edesc_ae_forward.1} parent=1 // pred_fallthru
      _
    // Predicated region
    $region86: #{edesc_ae_forward.1} parent=1 // pred_check
      _
    $region87: #{edesc_ae_forward.1} parent=1 // pred_check_branch
      %1057 = sbr.rel (0) target = $region89
    $region88: #{edesc_ae_forward.1} parent=1 // pred_region
      %1058 = dma.done [#allocation4], 512
    $region89: #{edesc_ae_forward.1} parent=1 // pred_fallthru
      _
    // Predicated region
    $region90: #{edesc_ae_forward.1} parent=1 // pred_check
      _
    $region91: #{edesc_ae_forward.1} parent=1 // pred_check_branch
      %1060 = sbr.rel (0) target = $region93
    $region92: #{edesc_ae_forward.1} parent=1 // pred_region
      _
    $region93: #{edesc_ae_forward.1} parent=1 // pred_fallthru
      _
    %1061 = vsyncpa [#allocation3], 1
    %1062 = vsyncpa [#allocation6], 1
    %1063 = vsyncpa [#allocation9], 1
    %1064 = vsyncpa [#allocation12], 1
    %1065 = vsyncpa [#allocation15], 1
    %1066 = vsyncpa [#allocation4], 1

</llo_original>
